<compile_context>
chip_gen: v5e
topology: v5e:2x2
jax: 0.10.0
libtpu: 0.0.40
codegen_flags: <defaults>
</compile_context>

<pallas_src>
import functools

import jax
import jax.numpy as jnp
from jax.experimental import pallas as pl
from jax.experimental.pallas import tpu as pltpu


def _round_up(x, m):
    return (x + m - 1) // m * m


def _pgnn_layer_kernel(gath_ref, dt_ref, feat_ref, wa_ref, wb_ref, bh_ref,
                       out_ref, self_ref, *, num_anchors):
    """Grid = (node_tiles, anchor_blocks); anchor_blocks is the reduction axis.

    gath_ref : (Kb, tn, F)  gathered neighbour features for this anchor block
    dt_ref   : (Kb, tn, 1)  precomputed dist-MLP scalars
    feat_ref : (tn, F)      self features for this node tile
    wa/wb    : (F, O_pad)   message / self halves of linear_hidden
    bh_ref   : (1, O_pad)   bias of linear_hidden
    out_ref  : (tn, O_pad)  f32 accumulator (revisited across anchor blocks)
    self_ref : (tn, O_pad)  VMEM scratch caching feature @ Wb + bh
    """
    kb = pl.program_id(1)

    # ---- first anchor block: zero the accumulator and cache the self
    # projection once per node tile (reused by every anchor block). ----------
    @pl.when(kb == 0)
    def _init():
        self_ref[...] = (
            jnp.dot(feat_ref[...], wb_ref[...],
                    preferred_element_type=jnp.float32) + bh_ref[...])
        out_ref[...] = jnp.zeros_like(out_ref)

    kb_n, tn, f = gath_ref.shape
    o = out_ref.shape[1]

    # message features: gathered * d_t, then one stacked MXU matmul.
    scaled = gath_ref[...] * dt_ref[...]                                # (Kb, tn, F)
    msg = jnp.dot(scaled.reshape(kb_n * tn, f), wa_ref[...],
                  preferred_element_type=jnp.float32).reshape(kb_n, tn, o)

    contrib = jnp.maximum(msg + self_ref[...], 0.0)                     # (Kb, tn, O)
    out_ref[...] += jnp.sum(contrib, axis=0)

    # ---- last anchor block: finish the mean over all K anchors. -------------
    @pl.when(kb == pl.num_programs(1) - 1)
    def _finalize():
        out_ref[...] *= jnp.float32(1.0 / num_anchors)


def pgnn_layer(feature, dists_max, dists_argmax, params, *,
               tile_n=128, max_anchor_block=16):
    """PGNN_layer forward.

    feature (N, F) f32, dists_max (N, K) f32, dists_argmax (N, K) int.
    params: w1 (1,H), b1 (1,H), w2 (1,H), b2 (1,1)  -- dist_compute Nonlinear(1,H,1)
            w_hidden (2F, O), b_hidden (1, O)       -- linear_hidden (already x@W form)
    """
    N, F = feature.shape
    K = dists_max.shape[1]
    w_full = params["w_hidden"].astype(jnp.float32)          # (2F, O)
    O = w_full.shape[1]

    feature = feature.astype(jnp.float32)
    dmax = dists_max.astype(jnp.float32)
    darg = dists_argmax.astype(jnp.int32)
    # NOTE: out-of-range indices are clamped by jnp.take (unlike torch indexing).

    # ---- hoisted to the wrapper: scalar dist MLP + row gather (O(N*K) work). -
    hidden = jnp.maximum(dmax[..., None] * params["w1"][0] + params["b1"][0], 0.0)
    d_t = jnp.sum(hidden * params["w2"][0], axis=-1) + params["b2"][0, 0]   # (N, K)
    gathered = jnp.take(feature, darg.reshape(-1), axis=0).reshape(N, K, F)

    # ---- tiling choices ------------------------------------------------------
    # >= 2 node tiles when possible so v7x's two TensorCores both get work.
    tn = min(tile_n, max(8, _round_up(pl.cdiv(N, 2), 8)))
    n_pad = _round_up(N, tn)
    o_pad = _round_up(O, 128)       # lane-dense stores + wide MXU N-dim
    # anchor block: all K when small, else largest divisor <= max_anchor_block.
    kb = next(k for k in range(min(K, max_anchor_block), 0, -1) if K % k == 0)

    pad_n = n_pad - N
    feat_p = jnp.pad(feature, ((0, pad_n), (0, 0)))                          # (n_pad, F)
    gath_p = jnp.pad(gathered.transpose(1, 0, 2), ((0, 0), (0, pad_n), (0, 0)))  # (K, n_pad, F)
    dt_p = jnp.pad(d_t.T[..., None], ((0, 0), (0, pad_n), (0, 0)))           # (K, n_pad, 1)

    wa = jnp.pad(w_full[:F], ((0, 0), (0, o_pad - O)))                       # (F, O_pad)
    wb = jnp.pad(w_full[F:], ((0, 0), (0, o_pad - O)))                       # (F, O_pad)
    bh = jnp.pad(params["b_hidden"].astype(jnp.float32), ((0, 0), (0, o_pad - O)))

    kernel = functools.partial(_pgnn_layer_kernel, num_anchors=K)
    const = lambda i, a: (0, 0)

    out = pl.pallas_call(
        kernel,
        out_shape=jax.ShapeDtypeStruct((n_pad, o_pad), jnp.float32),
        grid_spec=pltpu.PrefetchScalarGridSpec(
            num_scalar_prefetch=0,
            grid=(n_pad // tn, K // kb),
            in_specs=[
                pl.BlockSpec((kb, tn, F), lambda i, a: (a, i, 0)),   # gathered msgs
                pl.BlockSpec((kb, tn, 1), lambda i, a: (a, i, 0)),   # d_t scalars
                pl.BlockSpec((tn, F), lambda i, a: (i, 0)),          # self features
                pl.BlockSpec((F, o_pad), const),                     # Wa (resident)
                pl.BlockSpec((F, o_pad), const),                     # Wb (resident)
                pl.BlockSpec((1, o_pad), const),                     # bias (resident)
            ],
            out_specs=pl.BlockSpec((tn, o_pad), lambda i, a: (i, 0)),
            scratch_shapes=[pltpu.VMEM((tn, o_pad), jnp.float32)],   # cached self proj
        ),
        # NOTE: on v6e/v5e one can raise vmem_limit_bytes for bigger tn; on v7x
        # keep the default / <=48 MiB (64 MiB physical).  Defaults suffice here.
        compiler_params=pltpu.CompilerParams(
            dimension_semantics=("parallel", "arbitrary")),
    )(gath_p, dt_p, feat_p, wa, wb, bh)

    return out[:N, :O]


if __name__ == "__main__":
    key = jax.random.PRNGKey(0)
    N, F, O, K = 64, 32, 32, 8          # nodes, input_dim, output_dim, anchor sets
    ks = jax.random.split(key, 6)

    feature = jax.random.normal(ks[0], (N, F), jnp.float32)
    dists_max = jax.random.uniform(ks[1], (N, K), jnp.float32)
    dists_argmax = jax.random.randint(ks[2], (N, K), 0, N)

    def xavier(k, shape, gain=1.4142135):
        fan_in, fan_out = shape
        bound = gain * (6.0 / (fan_in + fan_out)) ** 0.5
        return jax.random.uniform(k, shape, jnp.float32, -bound, bound)

    # dist_compute = Nonlinear(1, O, 1); stored as (in, out) rows for x @ W.
    w1 = xavier(ks[3], (1, O))
    b1 = jnp.zeros((1, O), jnp.float32)
    w2 = xavier(ks[4], (O, 1)).reshape(1, O)     # row form of Linear(O,1) weight
    b2 = jnp.zeros((1, 1), jnp.float32)
    # linear_hidden: Linear(2F, O) as x @ W (i.e. transposed PyTorch weight).
    w_full = xavier(ks[5], (2 * F, O))
    bh = jnp.zeros((1, O), jnp.float32)

    params = dict(w1=w1, b1=b1, w2=w2, b2=b2, w_hidden=w_full, b_hidden=bh)

    out = pgnn_layer(feature, dists_max, dists_argmax, params)
    out = jax.block_until_ready(out)
    assert out.shape == (N, O)

    # Pure-JAX reference mirroring the PyTorch forward exactly.
    def reference(feat, dmax, darg):
        h = jnp.maximum(dmax[..., None] * w1[0] + b1[0], 0.0)       # (N,K,O)
        d_t = jnp.sum(h * w2[0], axis=-1) + b2[0, 0]                # (N,K)
        subset = feat[darg.reshape(-1)].reshape(N, K, F)
        msgs = jnp.concatenate(
            [subset * d_t[..., None],
             jnp.broadcast_to(feat[:, None, :], (N, K, F))], axis=-1)
        msgs = jnp.maximum(msgs @ w_full + bh[0], 0.0)
        return jnp.mean(msgs, axis=1)

    ref = reference(feature, dists_max, dists_argmax)
    assert jnp.allclose(out, ref, atol=5e-2, rtol=5e-2), \
        f"max abs err {jnp.max(jnp.abs(out - ref))}"
    print("KERNEL_OK")
</pallas_src>

<mosaic_0001>
module attributes {stable_mosaic.version = 11 : i64} {
  func.func @_pgnn_layer_kernel(%arg0: i32, %arg1: i32, %arg2: memref<8x32x32xf32, #tpu.memory_space<vmem>>, %arg3: memref<8x32x1xf32, #tpu.memory_space<vmem>>, %arg4: memref<32x32xf32, #tpu.memory_space<vmem>>, %arg5: memref<32x128xf32, #tpu.memory_space<vmem>>, %arg6: memref<32x128xf32, #tpu.memory_space<vmem>>, %arg7: memref<1x128xf32, #tpu.memory_space<vmem>>, %arg8: memref<32x128xf32, #tpu.memory_space<vmem>>, %arg9: memref<32x128xf32, #tpu.memory_space<vmem>>) attributes {dimension_semantics = [#tpu.dimension_semantics<parallel>, #tpu.dimension_semantics<arbitrary>], iteration_bounds = array<i64: 2, 1>, scalar_prefetch = 0 : i64, scratch_operands = 1 : i64, tpu.core_type = #tpu.core_type<tc>, window_params = [{transform_indices = @transform_0, window_bounds = array<i64: 8, 32, 32>}, {transform_indices = @transform_1, window_bounds = array<i64: 8, 32, 1>}, {transform_indices = @transform_2, window_bounds = array<i64: 32, 32>}, {pipeline_mode = #tpu.pipeline_mode<synchronous>, transform_indices = @transform_3, window_bounds = array<i64: 32, 128>}, {pipeline_mode = #tpu.pipeline_mode<synchronous>, transform_indices = @transform_4, window_bounds = array<i64: 32, 128>}, {pipeline_mode = #tpu.pipeline_mode<synchronous>, transform_indices = @transform_5, window_bounds = array<i64: 1, 128>}, {transform_indices = @transform_6, window_bounds = array<i64: 32, 128>}]} {
    %c0_i32 = arith.constant 0 : i32
    %0 = arith.cmpi eq, %arg1, %c0_i32 : i32
    %1 = arith.extui %0 : i1 to i32
    %c0_i32_0 = arith.constant 0 : i32
    %2 = arith.cmpi ne, %1, %c0_i32_0 : i32
    scf.if %2 {
      %c0_18 = arith.constant 0 : index
      %c0_19 = arith.constant 0 : index
      %24 = vector.load %arg4[%c0_18, %c0_19] : memref<32x32xf32, #tpu.memory_space<vmem>>, vector<32x32xf32>
      %c0_20 = arith.constant 0 : index
      %c0_21 = arith.constant 0 : index
      %25 = vector.load %arg6[%c0_20, %c0_21] : memref<32x128xf32, #tpu.memory_space<vmem>>, vector<32x128xf32>
      %cst_22 = arith.constant dense<0.000000e+00> : vector<32x128xf32>
      %26 = tpu.matmul %24, %25, %cst_22 {dimension_numbers = #tpu.dot_dimension_numbers<[1], [0], [0], [1], [0, 0, 1, 1], [], []>} : vector<32x32xf32>, vector<32x128xf32>, vector<32x128xf32> -> vector<32x128xf32>
      %c0_23 = arith.constant 0 : index
      %c0_24 = arith.constant 0 : index
      %27 = vector.load %arg7[%c0_23, %c0_24] : memref<1x128xf32, #tpu.memory_space<vmem>>, vector<1x128xf32>
      %28 = vector.broadcast %27 : vector<1x128xf32> to vector<32x128xf32>
      %29 = arith.addf %26, %28 : vector<32x128xf32>
      %c0_25 = arith.constant 0 : index
      %c0_26 = arith.constant 0 : index
      %30 = vector.load %arg9[%c0_25, %c0_26] : memref<32x128xf32, #tpu.memory_space<vmem>>, vector<32x128xf32>
      tpu.vector_store %arg9[%c0_25, %c0_26], %29 {strides = array<i32>} : memref<32x128xf32, #tpu.memory_space<vmem>>, vector<32x128xf32>,
      %cst_27 = arith.constant 0.000000e+00 : f32
      %31 = vector.broadcast %cst_27 : f32 to vector<32x128xf32>
      %c0_28 = arith.constant 0 : index
      %c0_29 = arith.constant 0 : index
      %32 = vector.load %arg8[%c0_28, %c0_29] : memref<32x128xf32, #tpu.memory_space<vmem>>, vector<32x128xf32>
      tpu.vector_store %arg8[%c0_28, %c0_29], %31 {strides = array<i32>} : memref<32x128xf32, #tpu.memory_space<vmem>>, vector<32x128xf32>,
    } else {
    }
    %c0 = arith.constant 0 : index
    %c0_1 = arith.constant 0 : index
    %c0_2 = arith.constant 0 : index
    %3 = vector.load %arg2[%c0, %c0_1, %c0_2] : memref<8x32x32xf32, #tpu.memory_space<vmem>>, vector<8x32x32xf32>
    %c0_3 = arith.constant 0 : index
    %c0_4 = arith.constant 0 : index
    %c0_5 = arith.constant 0 : index
    %4 = vector.load %arg3[%c0_3, %c0_4, %c0_5] : memref<8x32x1xf32, #tpu.memory_space<vmem>>, vector<8x32x1xf32>
    %5 = vector.broadcast %4 : vector<8x32x1xf32> to vector<8x32x32xf32>
    %6 = arith.mulf %3, %5 : vector<8x32x32xf32>
    %7 = vector.shape_cast %6 : vector<8x32x32xf32> to vector<256x32xf32>
    %c0_6 = arith.constant 0 : index
    %c0_7 = arith.constant 0 : index
    %8 = vector.load %arg5[%c0_6, %c0_7] : memref<32x128xf32, #tpu.memory_space<vmem>>, vector<32x128xf32>
    %cst = arith.constant dense<0.000000e+00> : vector<256x128xf32>
    %9 = tpu.matmul %7, %8, %cst {dimension_numbers = #tpu.dot_dimension_numbers<[1], [0], [0], [1], [0, 0, 1, 1], [], []>} : vector<256x32xf32>, vector<32x128xf32>, vector<256x128xf32> -> vector<256x128xf32>
    %10 = vector.shape_cast %9 : vector<256x128xf32> to vector<8x32x128xf32>
    %c0_8 = arith.constant 0 : index
    %c0_9 = arith.constant 0 : index
    %11 = vector.load %arg9[%c0_8, %c0_9] : memref<32x128xf32, #tpu.memory_space<vmem>>, vector<32x128xf32>
    %12 = vector.shape_cast %11 : vector<32x128xf32> to vector<1x32x128xf32>
    %13 = vector.broadcast %12 : vector<1x32x128xf32> to vector<8x32x128xf32>
    %14 = arith.addf %10, %13 : vector<8x32x128xf32>
    %cst_10 = arith.constant 0.000000e+00 : f32
    %15 = vector.broadcast %cst_10 : f32 to vector<8x32x128xf32>
    %16 = arith.maximumf %14, %15 : vector<8x32x128xf32>
    %c0_11 = arith.constant 0 : index
    %c0_12 = arith.constant 0 : index
    %17 = vector.load %arg8[%c0_11, %c0_12] : memref<32x128xf32, #tpu.memory_space<vmem>>, vector<32x128xf32>
    %cst_13 = arith.constant dense<0.000000e+00> : vector<32x128xf32>
    %18 = vector.multi_reduction <add>, %16, %cst_13 [0] : vector<8x32x128xf32> to vector<32x128xf32>
    %19 = arith.addf %17, %18 : vector<32x128xf32>
    %c0_14 = arith.constant 0 : index
    %c0_15 = arith.constant 0 : index
    %20 = vector.load %arg8[%c0_14, %c0_15] : memref<32x128xf32, #tpu.memory_space<vmem>>, vector<32x128xf32>
    tpu.vector_store %arg8[%c0_14, %c0_15], %19 {strides = array<i32>} : memref<32x128xf32, #tpu.memory_space<vmem>>, vector<32x128xf32>,
    %c0_i32_16 = arith.constant 0 : i32
    %21 = arith.cmpi eq, %arg1, %c0_i32_16 : i32
    %22 = arith.extui %21 : i1 to i32
    %c0_i32_17 = arith.constant 0 : i32
    %23 = arith.cmpi ne, %22, %c0_i32_17 : i32
    scf.if %23 {
      %c0_18 = arith.constant 0 : index
      %c0_19 = arith.constant 0 : index
      %24 = vector.load %arg8[%c0_18, %c0_19] : memref<32x128xf32, #tpu.memory_space<vmem>>, vector<32x128xf32>
      %cst_20 = arith.constant 1.250000e-01 : f32
      %25 = vector.broadcast %cst_20 : f32 to vector<32x128xf32>
      %26 = arith.mulf %24, %25 : vector<32x128xf32>
      %c0_21 = arith.constant 0 : index
      %c0_22 = arith.constant 0 : index
      %27 = vector.load %arg8[%c0_21, %c0_22] : memref<32x128xf32, #tpu.memory_space<vmem>>, vector<32x128xf32>
      tpu.vector_store %arg8[%c0_21, %c0_22], %26 {strides = array<i32>} : memref<32x128xf32, #tpu.memory_space<vmem>>, vector<32x128xf32>,
    } else {
    }
    return
  }
  func.func @transform_0(%arg0: i32, %arg1: i32) -> (i32, i32, i32) {
    %c0_i32 = arith.constant 0 : i32
    %c0_i32_0 = arith.constant 0 : i32
    return %arg1, %arg0, %c0_i32 : i32, i32, i32
  }
  func.func @transform_1(%arg0: i32, %arg1: i32) -> (i32, i32, i32) {
    %c0_i32 = arith.constant 0 : i32
    %c0_i32_0 = arith.constant 0 : i32
    return %arg1, %arg0, %c0_i32 : i32, i32, i32
  }
  func.func @transform_2(%arg0: i32, %arg1: i32) -> (i32, i32) {
    %c0_i32 = arith.constant 0 : i32
    %c0_i32_0 = arith.constant 0 : i32
    return %arg0, %c0_i32 : i32, i32
  }
  func.func @transform_3(%arg0: i32, %arg1: i32) -> (i32, i32) {
    %c0_i32 = arith.constant 0 : i32
    %c0_i32_0 = arith.constant 0 : i32
    %c0_i32_1 = arith.constant 0 : i32
    return %c0_i32, %c0_i32_0 : i32, i32
  }
  func.func @transform_4(%arg0: i32, %arg1: i32) -> (i32, i32) {
    %c0_i32 = arith.constant 0 : i32
    %c0_i32_0 = arith.constant 0 : i32
    %c0_i32_1 = arith.constant 0 : i32
    return %c0_i32, %c0_i32_0 : i32, i32
  }
  func.func @transform_5(%arg0: i32, %arg1: i32) -> (i32, i32) {
    %c0_i32 = arith.constant 0 : i32
    %c0_i32_0 = arith.constant 0 : i32
    %c0_i32_1 = arith.constant 0 : i32
    return %c0_i32, %c0_i32_0 : i32, i32
  }
  func.func @transform_6(%arg0: i32, %arg1: i32) -> (i32, i32) {
    %c0_i32 = arith.constant 0 : i32
    %c0_i32_0 = arith.constant 0 : i32
    return %arg0, %c0_i32 : i32, i32
  }
}

</mosaic_0001>

<llo_original>
// kernel: tpu_custom_call.1
$region0: #{tpu_custom_call.1}
  #allocation0 [shape = 'u32[]', space=smem, size = 0x4, offset = 0x4, fixed_abs, tag = 'smem constant byte address 0x4 - core index']
  #allocation1 [shape = 'u32[72,128]{1,0:T(1,128)}', space=vmem, size = 0x9000, scoped, tag = 'internal scratch']
  #allocation2 [shape = 'f32[32,128]{1,0:T(8,128)}', space=vmem, size = 0x4000, scoped, tag = 'scratch operand']
  %s0 = inlined_call_operand.vmem [shape: f32[8,64,32], index: 0, kind: input, shape index: {}]
  %s1 = inlined_call_operand.vmem [shape: f32[8,64,1], index: 1, kind: input, shape index: {}]
  %s2 = inlined_call_operand.vmem [shape: f32[64,32], index: 2, kind: input, shape index: {}]
  %s3 = inlined_call_operand.vmem [shape: f32[32,128], index: 3, kind: input, shape index: {}]
  %s4 = inlined_call_operand.vmem [shape: f32[32,128], index: 4, kind: input, shape index: {}]
  %s5 = inlined_call_operand.vmem [shape: f32[1,128], index: 5, kind: input, shape index: {}]
  %s6 = inlined_call_operand.hbm [shape: f32[64,128], index: 6, kind: output, shape index: {}]
  %s7 = sld [smem:[#allocation0]]
  $region141: #{tpu_custom_call.1} parent=0
    _
  %s9 = ssub.s32 1, %s7
  %s10 = scalar_select 0, %s9, %s7
  $region1: #{tpu_custom_call.1} parent=0
    #allocation3 [shape = 'u8[262144]{0}', space=vmem, size = 0x40000, scoped, tag = 'input window, operand 0']
    #allocation4 [shape = 'u8[262144]{0}', space=vmem, size = 0x40000, scoped, tag = 'input window, operand 1']
    #allocation5 [shape = 'u8[32768]{0}', space=vmem, size = 0x8000, scoped, tag = 'output window, operand 0']
    #allocation6 [shape = 's32[2]{0}', space=sflag, size = 0x8, scoped, tag = 'scoped memory for tpu_custom_call.1']
    %11 = vsyncpa [#allocation6], 0
    %s12 = scalar_lea.sflag [#allocation6], 1
    %13 = vsyncpa %s12, 0
    loop: start=0, step=1, limit=4
    $region2: #{tpu_custom_call.1} parent=1 // loop_pre_header
      _
    $region3: #{tpu_custom_call.1} parent=1 // loop_header
      %s15 = sphi 0, %s19
      %p16 = scmp.ge.s32.totalorder %s15, 4
      %s22 = sphi 0, %s34
      %s23 = sphi 0, %s30
      %s24 = sphi 0, %s22
      %s25 = sphi 0, %s23
      %s26 = sphi 0, %s24
      %s27 = sphi 0, %s25
      %s39 = sphi 0, %s41
      %s42 = sphi 0, %s39
      %s43 = sphi 0, %s42
      %s59 = sphi 0, %s43
      %s67 = sphi 0, %s69
      %s70 = sphi 0, %s67
      %s71 = sphi 0, %s70
      %s87 = sphi 0, %s71
      %s93 = sphi 0, %s95
      %s96 = sphi 0, %s93
      %s97 = sphi 0, %s96
      %s113 = sphi 0, %s97
      %s117 = sphi 0, %s117
      %s119 = sphi 0, %s117
      %s120 = sphi 0, %s119
      %s134 = sphi 0, %s120
      %s138 = sphi 0, %s138
      %s140 = sphi 0, %s138
      %s141 = sphi 0, %s140
      %s155 = sphi 0, %s141
      %s159 = sphi 0, %s159
      %s161 = sphi 0, %s159
      %s162 = sphi 0, %s161
      %s176 = sphi 0, %s162
      %s182 = sphi 0, %s184
      %s185 = sphi 0, %s182
      %s186 = sphi 0, %s185
      %s202 = sphi 0, %s186
    $region4: #{tpu_custom_call.1} parent=1 // loop_header_branch
      %18 = sbr.rel (%p16) target = $region8
    $region5: #{tpu_custom_call.1} parent=1 // loop_body
      %s20 = ssub.s32 %s15, 1
      %s21 = ssub.s32 %s15, 2
      %s28 = sadd.s32 1, %s23
      %p29 = scmp.ge.s32.totalorder %s28, 1
      %s30 = scalar_select %p29, 0, %s28
      %s31 = sadd.s32 1, %s22
      %s32 = scalar_select %p29, %s31, %s22
      %p33 = scmp.ge.s32.totalorder %s32, 2
      %s34 = scalar_select %p33, 0, %s32
      %s35 = ssub.s32 %s23, %s30
      %s36 = ssub.s32 %s22, %s34
      %s37 = sor.u32 %s35, %s36
      %p38 = scmp.eq.s32.totalorder %s37, 0
      %s40 = sadd.s32 %s39, 1
      %s41 = scalar_select %p38, %s39, %s40
      %p44 = pneg %p38
      %p45 = scmp.eq.s32.totalorder %s15, 1
      %p46 = por %p44, %p45
      %p47 = scmp.ne.s32.totalorder %s39, %s42
      %p48 = scmp.eq.s32.totalorder %s15, 0
      %p49 = por %p47, %p48
      %p50 = scmp.ne.s32.totalorder %s39, %s42
      %p51 = scmp.eq.s32.totalorder %s20, 1
      %p52 = por %p50, %p51
      %p53 = scmp.ne.s32.totalorder %s42, %s43
      %p54 = scmp.eq.s32.totalorder %s20, 0
      %p55 = por %p53, %p54
      %p56 = scmp.ne.s32.totalorder %s42, %s43
      %p57 = scmp.eq.s32.totalorder %s21, 1
      %p58 = por %p56, %p57
      %p60 = scmp.ne.s32.totalorder %s43, %s59
      %p61 = scmp.eq.s32.totalorder %s21, 0
      %p62 = por %p60, %p61
      %s63 = ssub.s32 %s23, %s30
      %s64 = ssub.s32 %s22, %s34
      %s65 = sor.u32 %s63, %s64
      %p66 = scmp.eq.s32.totalorder %s65, 0
      %s68 = sadd.s32 %s67, 1
      %s69 = scalar_select %p66, %s67, %s68
      %p72 = pneg %p66
      %p73 = scmp.eq.s32.totalorder %s15, 1
      %p74 = por %p72, %p73
      %p75 = scmp.ne.s32.totalorder %s67, %s70
      %p76 = scmp.eq.s32.totalorder %s15, 0
      %p77 = por %p75, %p76
      %p78 = scmp.ne.s32.totalorder %s67, %s70
      %p79 = scmp.eq.s32.totalorder %s20, 1
      %p80 = por %p78, %p79
      %p81 = scmp.ne.s32.totalorder %s70, %s71
      %p82 = scmp.eq.s32.totalorder %s20, 0
      %p83 = por %p81, %p82
      %p84 = scmp.ne.s32.totalorder %s70, %s71
      %p85 = scmp.eq.s32.totalorder %s21, 1
      %p86 = por %p84, %p85
      %p88 = scmp.ne.s32.totalorder %s71, %s87
      %p89 = scmp.eq.s32.totalorder %s21, 0
      %p90 = por %p88, %p89
      %s91 = ssub.s32 %s22, %s34
      %p92 = scmp.eq.s32.totalorder %s91, 0
      %s94 = sadd.s32 %s93, 1
      %s95 = scalar_select %p92, %s93, %s94
      %p98 = pneg %p92
      %p99 = scmp.eq.s32.totalorder %s15, 1
      %p100 = por %p98, %p99
      %p101 = scmp.ne.s32.totalorder %s93, %s96
      %p102 = scmp.eq.s32.totalorder %s15, 0
      %p103 = por %p101, %p102
      %p104 = scmp.ne.s32.totalorder %s93, %s96
      %p105 = scmp.eq.s32.totalorder %s20, 1
      %p106 = por %p104, %p105
      %p107 = scmp.ne.s32.totalorder %s96, %s97
      %p108 = scmp.eq.s32.totalorder %s20, 0
      %p109 = por %p107, %p108
      %p110 = scmp.ne.s32.totalorder %s96, %s97
      %p111 = scmp.eq.s32.totalorder %s21, 1
      %p112 = por %p110, %p111
      %p114 = scmp.ne.s32.totalorder %s97, %s113
      %p115 = scmp.eq.s32.totalorder %s21, 0
      %p116 = por %p114, %p115
      %s118 = sadd.s32 %s117, 1
      %p121 = scmp.eq.s32.totalorder %s15, 1
      %p122 = scmp.ne.s32.totalorder %s117, %s119
      %p123 = scmp.eq.s32.totalorder %s15, 0
      %p124 = por %p122, %p123
      %p125 = scmp.ne.s32.totalorder %s117, %s119
      %p126 = scmp.eq.s32.totalorder %s20, 1
      %p127 = por %p125, %p126
      %p128 = scmp.ne.s32.totalorder %s119, %s120
      %p129 = scmp.eq.s32.totalorder %s20, 0
      %p130 = por %p128, %p129
      %p131 = scmp.ne.s32.totalorder %s119, %s120
      %p132 = scmp.eq.s32.totalorder %s21, 1
      %p133 = por %p131, %p132
      %p135 = scmp.ne.s32.totalorder %s120, %s134
      %p136 = scmp.eq.s32.totalorder %s21, 0
      %p137 = por %p135, %p136
      %s139 = sadd.s32 %s138, 1
      %p142 = scmp.eq.s32.totalorder %s15, 1
      %p143 = scmp.ne.s32.totalorder %s138, %s140
      %p144 = scmp.eq.s32.totalorder %s15, 0
      %p145 = por %p143, %p144
      %p146 = scmp.ne.s32.totalorder %s138, %s140
      %p147 = scmp.eq.s32.totalorder %s20, 1
      %p148 = por %p146, %p147
      %p149 = scmp.ne.s32.totalorder %s140, %s141
      %p150 = scmp.eq.s32.totalorder %s20, 0
      %p151 = por %p149, %p150
      %p152 = scmp.ne.s32.totalorder %s140, %s141
      %p153 = scmp.eq.s32.totalorder %s21, 1
      %p154 = por %p152, %p153
      %p156 = scmp.ne.s32.totalorder %s141, %s155
      %p157 = scmp.eq.s32.totalorder %s21, 0
      %p158 = por %p156, %p157
      %s160 = sadd.s32 %s159, 1
      %p163 = scmp.eq.s32.totalorder %s15, 1
      %p164 = scmp.ne.s32.totalorder %s159, %s161
      %p165 = scmp.eq.s32.totalorder %s15, 0
      %p166 = por %p164, %p165
      %p167 = scmp.ne.s32.totalorder %s159, %s161
      %p168 = scmp.eq.s32.totalorder %s20, 1
      %p169 = por %p167, %p168
      %p170 = scmp.ne.s32.totalorder %s161, %s162
      %p171 = scmp.eq.s32.totalorder %s20, 0
      %p172 = por %p170, %p171
      %p173 = scmp.ne.s32.totalorder %s161, %s162
      %p174 = scmp.eq.s32.totalorder %s21, 1
      %p175 = por %p173, %p174
      %p177 = scmp.ne.s32.totalorder %s162, %s176
      %p178 = scmp.eq.s32.totalorder %s21, 0
      %p179 = por %p177, %p178
      %s180 = ssub.s32 %s22, %s34
      %p181 = scmp.eq.s32.totalorder %s180, 0
      %s183 = sadd.s32 %s182, 1
      %s184 = scalar_select %p181, %s182, %s183
      %p187 = pneg %p181
      %p188 = scmp.eq.s32.totalorder %s15, 1
      %p189 = por %p187, %p188
      %p190 = scmp.ne.s32.totalorder %s182, %s185
      %p191 = scmp.eq.s32.totalorder %s15, 0
      %p192 = por %p190, %p191
      %p193 = scmp.ne.s32.totalorder %s182, %s185
      %p194 = scmp.eq.s32.totalorder %s20, 1
      %p195 = por %p193, %p194
      %p196 = scmp.ne.s32.totalorder %s185, %s186
      %p197 = scmp.eq.s32.totalorder %s20, 0
      %p198 = por %p196, %p197
      %p199 = scmp.ne.s32.totalorder %s185, %s186
      %p200 = scmp.eq.s32.totalorder %s21, 1
      %p201 = por %p199, %p200
      %p203 = scmp.ne.s32.totalorder %s186, %s202
      %p204 = scmp.eq.s32.totalorder %s21, 0
      %p205 = por %p203, %p204
      %p206 = scmp.le.s32.totalorder 1, %s15
      %p207 = scmp.lt.s32.totalorder %s15, 3
      %p208 = pnand %p206, %p207
      %p209 = pneg %p208
      // Predicated region
      $region9: #{tpu_custom_call.1} parent=5 // pred_check
        _
      $region10: #{tpu_custom_call.1} parent=5 // pred_check_branch
        %211 = sbr.rel (%p208) target = $region12
      $region11: #{tpu_custom_call.1} parent=5 // pred_region
        %s212 = ssub.s32 %s15, 1
        // Predicated region
        $region13: #{tpu_custom_call.1} parent=11 // pred_check
          %p213 = pneg %p130
        $region14: #{tpu_custom_call.1} parent=11 // pred_check_branch
          %215 = sbr.rel (%p213) target = $region16
        $region15: #{tpu_custom_call.1} parent=11 // pred_region
          _
        $region16: #{tpu_custom_call.1} parent=11 // pred_fallthru
          _
        // Predicated region
        $region17: #{tpu_custom_call.1} parent=11 // pred_check
          %p216 = pneg %p151
        $region18: #{tpu_custom_call.1} parent=11 // pred_check_branch
          %218 = sbr.rel (%p216) target = $region20
        $region19: #{tpu_custom_call.1} parent=11 // pred_region
          _
        $region20: #{tpu_custom_call.1} parent=11 // pred_fallthru
          _
        // Predicated region
        $region21: #{tpu_custom_call.1} parent=11 // pred_check
          %p219 = pneg %p172
        $region22: #{tpu_custom_call.1} parent=11 // pred_check_branch
          %221 = sbr.rel (%p219) target = $region24
        $region23: #{tpu_custom_call.1} parent=11 // pred_region
          _
        $region24: #{tpu_custom_call.1} parent=11 // pred_fallthru
          _
      $region12: #{tpu_custom_call.1} parent=5 // pred_fallthru
        _
      %p222 = scmp.lt.s32.totalorder %s15, 2
      // Predicated region
      $region25: #{tpu_custom_call.1} parent=5 // pred_check
        %p223 = pneg %p222
      $region26: #{tpu_custom_call.1} parent=5 // pred_check_branch
        %225 = sbr.rel (%p223) target = $region28
      $region27: #{tpu_custom_call.1} parent=5 // pred_region
        // Predicated region
        $region29: #{tpu_custom_call.1} parent=27 // pred_check
          %p226 = pneg %p49
        $region30: #{tpu_custom_call.1} parent=27 // pred_check_branch
          %228 = sbr.rel (%p226) target = $region32
        $region31: #{tpu_custom_call.1} parent=27 // pred_region
          %s229 = sand.u32 %s39, 1
          %s230 = sand.u32 %s39, 1
          %s231 = smul.addr %s230, 256
          %s232 = scalar_lea.vmem [#allocation3], %s231
          %s233 = smul.u32 8, %s23
          %s234 = smul.u32 4, %s22
          %s235 = smul.addr %s233, 8
          %s236 = sadd.s32 %s234, %s235
          %s237 = smul.addr %s236, 8
          %s238 = scalar_lea.vmem %s0, %s237
          // Predicated region
          $region33: #{tpu_custom_call.1} parent=31 // pred_check
            _
          $region34: #{tpu_custom_call.1} parent=31 // pred_check_branch
            %240 = sbr.rel (0) target = $region36
          $region35: #{tpu_custom_call.1} parent=31 // pred_region
            // Predicated region
            $region37: #{tpu_custom_call.1} parent=35 // pred_check
              _
            $region38: #{tpu_custom_call.1} parent=35 // pred_check_branch
              %242 = sbr.rel (0) target = $region40
            $region39: #{tpu_custom_call.1} parent=35 // pred_region
              // Predicated region
              $region52: #{tpu_custom_call.1} parent=39 // pred_check
                _
              $region53: #{tpu_custom_call.1} parent=39 // pred_check_branch
                %320 = sbr.rel (0) target = $region55
              $region54: #{tpu_custom_call.1} parent=39 // pred_region
                loop: start=0, step=1, limit=1
                $region56: #{tpu_custom_call.1} parent=54 // loop_pre_header
                  _
                $region57: #{tpu_custom_call.1} parent=54 // loop_header
                  %s322 = sphi 0, %s326
                  %p323 = scmp.ge.s32.totalorder %s322, 1
                  %s327 = sphi %s238, %s238
                  %s328 = sphi %s232, %s232
                $region58: #{tpu_custom_call.1} parent=54 // loop_header_branch
                  %325 = sbr.rel (%p323) target = $region62
                $region59: #{tpu_custom_call.1} parent=54 // loop_body
                  %v329 = vld [vmem:[%s327] sm:$0xff]
                  %330 = vst [vmem:[%s328] sm:$0xff] %v329
                  %v331 = vld [vmem:[%s327 + $0x8] sm:$0xff]
                  %332 = vst [vmem:[%s328 + $0x8] sm:$0xff] %v331
                  %v333 = vld [vmem:[%s327 + $0x10] sm:$0xff]
                  %334 = vst [vmem:[%s328 + $0x10] sm:$0xff] %v333
                  %v335 = vld [vmem:[%s327 + $0x18] sm:$0xff]
                  %336 = vst [vmem:[%s328 + $0x18] sm:$0xff] %v335
                  %v337 = vld [vmem:[%s327 + $0x40] sm:$0xff]
                  %338 = vst [vmem:[%s328 + $0x20] sm:$0xff] %v337
                  %v339 = vld [vmem:[%s327 + $0x48] sm:$0xff]
                  %340 = vst [vmem:[%s328 + $0x28] sm:$0xff] %v339
                  %v341 = vld [vmem:[%s327 + $0x50] sm:$0xff]
                  %342 = vst [vmem:[%s328 + $0x30] sm:$0xff] %v341
                  %v343 = vld [vmem:[%s327 + $0x58] sm:$0xff]
                  %344 = vst [vmem:[%s328 + $0x38] sm:$0xff] %v343
                  %v345 = vld [vmem:[%s327 + $0x80] sm:$0xff]
                  %346 = vst [vmem:[%s328 + $0x40] sm:$0xff] %v345
                  %v347 = vld [vmem:[%s327 + $0x88] sm:$0xff]
                  %348 = vst [vmem:[%s328 + $0x48] sm:$0xff] %v347
                  %v349 = vld [vmem:[%s327 + $0x90] sm:$0xff]
                  %350 = vst [vmem:[%s328 + $0x50] sm:$0xff] %v349
                  %v351 = vld [vmem:[%s327 + $0x98] sm:$0xff]
                  %352 = vst [vmem:[%s328 + $0x58] sm:$0xff] %v351
                  %v353 = vld [vmem:[%s327 + $0xc0] sm:$0xff]
                  %354 = vst [vmem:[%s328 + $0x60] sm:$0xff] %v353
                  %v355 = vld [vmem:[%s327 + $0xc8] sm:$0xff]
                  %356 = vst [vmem:[%s328 + $0x68] sm:$0xff] %v355
                  %v357 = vld [vmem:[%s327 + $0xd0] sm:$0xff]
                  %358 = vst [vmem:[%s328 + $0x70] sm:$0xff] %v357
                  %v359 = vld [vmem:[%s327 + $0xd8] sm:$0xff]
                  %360 = vst [vmem:[%s328 + $0x78] sm:$0xff] %v359
                  %v361 = vld [vmem:[%s327 + $0x100] sm:$0xff]
                  %362 = vst [vmem:[%s328 + $0x80] sm:$0xff] %v361
                  %v363 = vld [vmem:[%s327 + $0x108] sm:$0xff]
                  %364 = vst [vmem:[%s328 + $0x88] sm:$0xff] %v363
                  %v365 = vld [vmem:[%s327 + $0x110] sm:$0xff]
                  %366 = vst [vmem:[%s328 + $0x90] sm:$0xff] %v365
                  %v367 = vld [vmem:[%s327 + $0x118] sm:$0xff]
                  %368 = vst [vmem:[%s328 + $0x98] sm:$0xff] %v367
                  %v369 = vld [vmem:[%s327 + $0x140] sm:$0xff]
                  %370 = vst [vmem:[%s328 + $0xa0] sm:$0xff] %v369
                  %v371 = vld [vmem:[%s327 + $0x148] sm:$0xff]
                  %372 = vst [vmem:[%s328 + $0xa8] sm:$0xff] %v371
                  %v373 = vld [vmem:[%s327 + $0x150] sm:$0xff]
                  %374 = vst [vmem:[%s328 + $0xb0] sm:$0xff] %v373
                  %v375 = vld [vmem:[%s327 + $0x158] sm:$0xff]
                  %376 = vst [vmem:[%s328 + $0xb8] sm:$0xff] %v375
                  %v377 = vld [vmem:[%s327 + $0x180] sm:$0xff]
                  %378 = vst [vmem:[%s328 + $0xc0] sm:$0xff] %v377
                  %v379 = vld [vmem:[%s327 + $0x188] sm:$0xff]
                  %380 = vst [vmem:[%s328 + $0xc8] sm:$0xff] %v379
                  %v381 = vld [vmem:[%s327 + $0x190] sm:$0xff]
                  %382 = vst [vmem:[%s328 + $0xd0] sm:$0xff] %v381
                  %v383 = vld [vmem:[%s327 + $0x198] sm:$0xff]
                  %384 = vst [vmem:[%s328 + $0xd8] sm:$0xff] %v383
                  %v385 = vld [vmem:[%s327 + $0x1c0] sm:$0xff]
                  %386 = vst [vmem:[%s328 + $0xe0] sm:$0xff] %v385
                  %v387 = vld [vmem:[%s327 + $0x1c8] sm:$0xff]
                  %388 = vst [vmem:[%s328 + $0xe8] sm:$0xff] %v387
                  %v389 = vld [vmem:[%s327 + $0x1d0] sm:$0xff]
                  %390 = vst [vmem:[%s328 + $0xf0] sm:$0xff] %v389
                  %v391 = vld [vmem:[%s327 + $0x1d8] sm:$0xff]
                  %392 = vst [vmem:[%s328 + $0xf8] sm:$0xff] %v391
                $region60: #{tpu_custom_call.1} parent=54 // loop_footer
                  %s326 = sadd.s32 1, %s322
                $region61: #{tpu_custom_call.1} parent=54 // loop_footer_branch
                  %321 = sbr.rel target = $region57
                $region62: #{tpu_custom_call.1} parent=54 // loop_exit
                  _
              $region55: #{tpu_custom_call.1} parent=39 // pred_fallthru
                _
              // Predicated region
              $region63: #{tpu_custom_call.1} parent=39 // pred_check
                _
              $region64: #{tpu_custom_call.1} parent=39 // pred_check_branch
                %394 = sbr.rel target = $region66
              $region65: #{tpu_custom_call.1} parent=39 // pred_region
                _
              $region66: #{tpu_custom_call.1} parent=39 // pred_fallthru
                _
            $region40: #{tpu_custom_call.1} parent=35 // pred_fallthru
              _
            // Predicated region
            $region41: #{tpu_custom_call.1} parent=35 // pred_check
              _
            $region42: #{tpu_custom_call.1} parent=35 // pred_check_branch
              %244 = sbr.rel target = $region44
            $region43: #{tpu_custom_call.1} parent=35 // pred_region
              %s246 = ssub.s32 256, 1
              loop: start=0, step=1, limit=1
              $region45: #{tpu_custom_call.1} parent=43 // loop_pre_header
                _
              $region46: #{tpu_custom_call.1} parent=43 // loop_header
                %s248 = sphi 0, %s252
                %p249 = scmp.ge.s32.totalorder %s248, 1
                %s253 = sphi %s238, %s238
                %s254 = sphi %s232, %s232
              $region47: #{tpu_custom_call.1} parent=43 // loop_header_branch
                %251 = sbr.rel (%p249) target = $region51
              $region48: #{tpu_custom_call.1} parent=43 // loop_body
                %v255 = vld [vmem:[%s253] sm:%s246]
                %256 = vst [vmem:[%s254] sm:%s246] %v255
                %v257 = vld [vmem:[%s253 + $0x8] sm:%s246]
                %258 = vst [vmem:[%s254 + $0x8] sm:%s246] %v257
                %v259 = vld [vmem:[%s253 + $0x10] sm:%s246]
                %260 = vst [vmem:[%s254 + $0x10] sm:%s246] %v259
                %v261 = vld [vmem:[%s253 + $0x18] sm:%s246]
                %262 = vst [vmem:[%s254 + $0x18] sm:%s246] %v261
                %v263 = vld [vmem:[%s253 + $0x40] sm:%s246]
                %264 = vst [vmem:[%s254 + $0x20] sm:%s246] %v263
                %v265 = vld [vmem:[%s253 + $0x48] sm:%s246]
                %266 = vst [vmem:[%s254 + $0x28] sm:%s246] %v265
                %v267 = vld [vmem:[%s253 + $0x50] sm:%s246]
                %268 = vst [vmem:[%s254 + $0x30] sm:%s246] %v267
                %v269 = vld [vmem:[%s253 + $0x58] sm:%s246]
                %270 = vst [vmem:[%s254 + $0x38] sm:%s246] %v269
                %v271 = vld [vmem:[%s253 + $0x80] sm:%s246]
                %272 = vst [vmem:[%s254 + $0x40] sm:%s246] %v271
                %v273 = vld [vmem:[%s253 + $0x88] sm:%s246]
                %274 = vst [vmem:[%s254 + $0x48] sm:%s246] %v273
                %v275 = vld [vmem:[%s253 + $0x90] sm:%s246]
                %276 = vst [vmem:[%s254 + $0x50] sm:%s246] %v275
                %v277 = vld [vmem:[%s253 + $0x98] sm:%s246]
                %278 = vst [vmem:[%s254 + $0x58] sm:%s246] %v277
                %v279 = vld [vmem:[%s253 + $0xc0] sm:%s246]
                %280 = vst [vmem:[%s254 + $0x60] sm:%s246] %v279
                %v281 = vld [vmem:[%s253 + $0xc8] sm:%s246]
                %282 = vst [vmem:[%s254 + $0x68] sm:%s246] %v281
                %v283 = vld [vmem:[%s253 + $0xd0] sm:%s246]
                %284 = vst [vmem:[%s254 + $0x70] sm:%s246] %v283
                %v285 = vld [vmem:[%s253 + $0xd8] sm:%s246]
                %286 = vst [vmem:[%s254 + $0x78] sm:%s246] %v285
                %v287 = vld [vmem:[%s253 + $0x100] sm:%s246]
                %288 = vst [vmem:[%s254 + $0x80] sm:%s246] %v287
                %v289 = vld [vmem:[%s253 + $0x108] sm:%s246]
                %290 = vst [vmem:[%s254 + $0x88] sm:%s246] %v289
                %v291 = vld [vmem:[%s253 + $0x110] sm:%s246]
                %292 = vst [vmem:[%s254 + $0x90] sm:%s246] %v291
                %v293 = vld [vmem:[%s253 + $0x118] sm:%s246]
                %294 = vst [vmem:[%s254 + $0x98] sm:%s246] %v293
                %v295 = vld [vmem:[%s253 + $0x140] sm:%s246]
                %296 = vst [vmem:[%s254 + $0xa0] sm:%s246] %v295
                %v297 = vld [vmem:[%s253 + $0x148] sm:%s246]
                %298 = vst [vmem:[%s254 + $0xa8] sm:%s246] %v297
                %v299 = vld [vmem:[%s253 + $0x150] sm:%s246]
                %300 = vst [vmem:[%s254 + $0xb0] sm:%s246] %v299
                %v301 = vld [vmem:[%s253 + $0x158] sm:%s246]
                %302 = vst [vmem:[%s254 + $0xb8] sm:%s246] %v301
                %v303 = vld [vmem:[%s253 + $0x180] sm:%s246]
                %304 = vst [vmem:[%s254 + $0xc0] sm:%s246] %v303
                %v305 = vld [vmem:[%s253 + $0x188] sm:%s246]
                %306 = vst [vmem:[%s254 + $0xc8] sm:%s246] %v305
                %v307 = vld [vmem:[%s253 + $0x190] sm:%s246]
                %308 = vst [vmem:[%s254 + $0xd0] sm:%s246] %v307
                %v309 = vld [vmem:[%s253 + $0x198] sm:%s246]
                %310 = vst [vmem:[%s254 + $0xd8] sm:%s246] %v309
                %v311 = vld [vmem:[%s253 + $0x1c0] sm:%s246]
                %312 = vst [vmem:[%s254 + $0xe0] sm:%s246] %v311
                %v313 = vld [vmem:[%s253 + $0x1c8] sm:%s246]
                %314 = vst [vmem:[%s254 + $0xe8] sm:%s246] %v313
                %v315 = vld [vmem:[%s253 + $0x1d0] sm:%s246]
                %316 = vst [vmem:[%s254 + $0xf0] sm:%s246] %v315
                %v317 = vld [vmem:[%s253 + $0x1d8] sm:%s246]
                %318 = vst [vmem:[%s254 + $0xf8] sm:%s246] %v317
              $region49: #{tpu_custom_call.1} parent=43 // loop_footer
                %s252 = sadd.s32 1, %s248
              $region50: #{tpu_custom_call.1} parent=43 // loop_footer_branch
                %247 = sbr.rel target = $region46
              $region51: #{tpu_custom_call.1} parent=43 // loop_exit
                _
            $region44: #{tpu_custom_call.1} parent=35 // pred_fallthru
              _
          $region36: #{tpu_custom_call.1} parent=31 // pred_fallthru
            _
          %395 = vnop
        $region32: #{tpu_custom_call.1} parent=27 // pred_fallthru
          _
        // Predicated region
        $region67: #{tpu_custom_call.1} parent=27 // pred_check
          %p396 = pneg %p77
        $region68: #{tpu_custom_call.1} parent=27 // pred_check_branch
          %398 = sbr.rel (%p396) target = $region70
        $region69: #{tpu_custom_call.1} parent=27 // pred_region
          %s399 = sand.u32 %s67, 1
          %s400 = sand.u32 %s67, 1
          %s401 = smul.addr %s400, 256
          %s402 = scalar_lea.vmem [#allocation4], %s401
          %s403 = smul.u32 8, %s23
          %s404 = smul.u32 4, %s22
          %s405 = smul.addr %s403, 8
          %s406 = sadd.s32 %s404, %s405
          %s407 = smul.addr %s406, 8
          %s408 = scalar_lea.vmem %s1, %s407
          // Predicated region
          $region71: #{tpu_custom_call.1} parent=69 // pred_check
            _
          $region72: #{tpu_custom_call.1} parent=69 // pred_check_branch
            %410 = sbr.rel (0) target = $region74
          $region73: #{tpu_custom_call.1} parent=69 // pred_region
            // Predicated region
            $region75: #{tpu_custom_call.1} parent=73 // pred_check
              _
            $region76: #{tpu_custom_call.1} parent=73 // pred_check_branch
              %412 = sbr.rel (0) target = $region78
            $region77: #{tpu_custom_call.1} parent=73 // pred_region
              // Predicated region
              $region90: #{tpu_custom_call.1} parent=77 // pred_check
                _
              $region91: #{tpu_custom_call.1} parent=77 // pred_check_branch
                %490 = sbr.rel (0) target = $region93
              $region92: #{tpu_custom_call.1} parent=77 // pred_region
                loop: start=0, step=1, limit=1
                $region94: #{tpu_custom_call.1} parent=92 // loop_pre_header
                  _
                $region95: #{tpu_custom_call.1} parent=92 // loop_header
                  %s492 = sphi 0, %s496
                  %p493 = scmp.ge.s32.totalorder %s492, 1
                  %s497 = sphi %s408, %s408
                  %s498 = sphi %s402, %s402
                $region96: #{tpu_custom_call.1} parent=92 // loop_header_branch
                  %495 = sbr.rel (%p493) target = $region100
                $region97: #{tpu_custom_call.1} parent=92 // loop_body
                  %v499 = vld [vmem:[%s497] sm:$0xff]
                  %500 = vst [vmem:[%s498] sm:$0xff] %v499
                  %v501 = vld [vmem:[%s497 + $0x8] sm:$0xff]
                  %502 = vst [vmem:[%s498 + $0x8] sm:$0xff] %v501
                  %v503 = vld [vmem:[%s497 + $0x10] sm:$0xff]
                  %504 = vst [vmem:[%s498 + $0x10] sm:$0xff] %v503
                  %v505 = vld [vmem:[%s497 + $0x18] sm:$0xff]
                  %506 = vst [vmem:[%s498 + $0x18] sm:$0xff] %v505
                  %v507 = vld [vmem:[%s497 + $0x40] sm:$0xff]
                  %508 = vst [vmem:[%s498 + $0x20] sm:$0xff] %v507
                  %v509 = vld [vmem:[%s497 + $0x48] sm:$0xff]
                  %510 = vst [vmem:[%s498 + $0x28] sm:$0xff] %v509
                  %v511 = vld [vmem:[%s497 + $0x50] sm:$0xff]
                  %512 = vst [vmem:[%s498 + $0x30] sm:$0xff] %v511
                  %v513 = vld [vmem:[%s497 + $0x58] sm:$0xff]
                  %514 = vst [vmem:[%s498 + $0x38] sm:$0xff] %v513
                  %v515 = vld [vmem:[%s497 + $0x80] sm:$0xff]
                  %516 = vst [vmem:[%s498 + $0x40] sm:$0xff] %v515
                  %v517 = vld [vmem:[%s497 + $0x88] sm:$0xff]
                  %518 = vst [vmem:[%s498 + $0x48] sm:$0xff] %v517
                  %v519 = vld [vmem:[%s497 + $0x90] sm:$0xff]
                  %520 = vst [vmem:[%s498 + $0x50] sm:$0xff] %v519
                  %v521 = vld [vmem:[%s497 + $0x98] sm:$0xff]
                  %522 = vst [vmem:[%s498 + $0x58] sm:$0xff] %v521
                  %v523 = vld [vmem:[%s497 + $0xc0] sm:$0xff]
                  %524 = vst [vmem:[%s498 + $0x60] sm:$0xff] %v523
                  %v525 = vld [vmem:[%s497 + $0xc8] sm:$0xff]
                  %526 = vst [vmem:[%s498 + $0x68] sm:$0xff] %v525
                  %v527 = vld [vmem:[%s497 + $0xd0] sm:$0xff]
                  %528 = vst [vmem:[%s498 + $0x70] sm:$0xff] %v527
                  %v529 = vld [vmem:[%s497 + $0xd8] sm:$0xff]
                  %530 = vst [vmem:[%s498 + $0x78] sm:$0xff] %v529
                  %v531 = vld [vmem:[%s497 + $0x100] sm:$0xff]
                  %532 = vst [vmem:[%s498 + $0x80] sm:$0xff] %v531
                  %v533 = vld [vmem:[%s497 + $0x108] sm:$0xff]
                  %534 = vst [vmem:[%s498 + $0x88] sm:$0xff] %v533
                  %v535 = vld [vmem:[%s497 + $0x110] sm:$0xff]
                  %536 = vst [vmem:[%s498 + $0x90] sm:$0xff] %v535
                  %v537 = vld [vmem:[%s497 + $0x118] sm:$0xff]
                  %538 = vst [vmem:[%s498 + $0x98] sm:$0xff] %v537
                  %v539 = vld [vmem:[%s497 + $0x140] sm:$0xff]
                  %540 = vst [vmem:[%s498 + $0xa0] sm:$0xff] %v539
                  %v541 = vld [vmem:[%s497 + $0x148] sm:$0xff]
                  %542 = vst [vmem:[%s498 + $0xa8] sm:$0xff] %v541
                  %v543 = vld [vmem:[%s497 + $0x150] sm:$0xff]
                  %544 = vst [vmem:[%s498 + $0xb0] sm:$0xff] %v543
                  %v545 = vld [vmem:[%s497 + $0x158] sm:$0xff]
                  %546 = vst [vmem:[%s498 + $0xb8] sm:$0xff] %v545
                  %v547 = vld [vmem:[%s497 + $0x180] sm:$0xff]
                  %548 = vst [vmem:[%s498 + $0xc0] sm:$0xff] %v547
                  %v549 = vld [vmem:[%s497 + $0x188] sm:$0xff]
                  %550 = vst [vmem:[%s498 + $0xc8] sm:$0xff] %v549
                  %v551 = vld [vmem:[%s497 + $0x190] sm:$0xff]
                  %552 = vst [vmem:[%s498 + $0xd0] sm:$0xff] %v551
                  %v553 = vld [vmem:[%s497 + $0x198] sm:$0xff]
                  %554 = vst [vmem:[%s498 + $0xd8] sm:$0xff] %v553
                  %v555 = vld [vmem:[%s497 + $0x1c0] sm:$0xff]
                  %556 = vst [vmem:[%s498 + $0xe0] sm:$0xff] %v555
                  %v557 = vld [vmem:[%s497 + $0x1c8] sm:$0xff]
                  %558 = vst [vmem:[%s498 + $0xe8] sm:$0xff] %v557
                  %v559 = vld [vmem:[%s497 + $0x1d0] sm:$0xff]
                  %560 = vst [vmem:[%s498 + $0xf0] sm:$0xff] %v559
                  %v561 = vld [vmem:[%s497 + $0x1d8] sm:$0xff]
                  %562 = vst [vmem:[%s498 + $0xf8] sm:$0xff] %v561
                $region98: #{tpu_custom_call.1} parent=92 // loop_footer
                  %s496 = sadd.s32 1, %s492
                $region99: #{tpu_custom_call.1} parent=92 // loop_footer_branch
                  %491 = sbr.rel target = $region95
                $region100: #{tpu_custom_call.1} parent=92 // loop_exit
                  _
              $region93: #{tpu_custom_call.1} parent=77 // pred_fallthru
                _
              // Predicated region
              $region101: #{tpu_custom_call.1} parent=77 // pred_check
                _
              $region102: #{tpu_custom_call.1} parent=77 // pred_check_branch
                %564 = sbr.rel target = $region104
              $region103: #{tpu_custom_call.1} parent=77 // pred_region
                _
              $region104: #{tpu_custom_call.1} parent=77 // pred_fallthru
                _
            $region78: #{tpu_custom_call.1} parent=73 // pred_fallthru
              _
            // Predicated region
            $region79: #{tpu_custom_call.1} parent=73 // pred_check
              _
            $region80: #{tpu_custom_call.1} parent=73 // pred_check_branch
              %414 = sbr.rel target = $region82
            $region81: #{tpu_custom_call.1} parent=73 // pred_region
              %s416 = ssub.s32 256, 1
              loop: start=0, step=1, limit=1
              $region83: #{tpu_custom_call.1} parent=81 // loop_pre_header
                _
              $region84: #{tpu_custom_call.1} parent=81 // loop_header
                %s418 = sphi 0, %s422
                %p419 = scmp.ge.s32.totalorder %s418, 1
                %s423 = sphi %s408, %s408
                %s424 = sphi %s402, %s402
              $region85: #{tpu_custom_call.1} parent=81 // loop_header_branch
                %421 = sbr.rel (%p419) target = $region89
              $region86: #{tpu_custom_call.1} parent=81 // loop_body
                %v425 = vld [vmem:[%s423] sm:%s416]
                %426 = vst [vmem:[%s424] sm:%s416] %v425
                %v427 = vld [vmem:[%s423 + $0x8] sm:%s416]
                %428 = vst [vmem:[%s424 + $0x8] sm:%s416] %v427
                %v429 = vld [vmem:[%s423 + $0x10] sm:%s416]
                %430 = vst [vmem:[%s424 + $0x10] sm:%s416] %v429
                %v431 = vld [vmem:[%s423 + $0x18] sm:%s416]
                %432 = vst [vmem:[%s424 + $0x18] sm:%s416] %v431
                %v433 = vld [vmem:[%s423 + $0x40] sm:%s416]
                %434 = vst [vmem:[%s424 + $0x20] sm:%s416] %v433
                %v435 = vld [vmem:[%s423 + $0x48] sm:%s416]
                %436 = vst [vmem:[%s424 + $0x28] sm:%s416] %v435
                %v437 = vld [vmem:[%s423 + $0x50] sm:%s416]
                %438 = vst [vmem:[%s424 + $0x30] sm:%s416] %v437
                %v439 = vld [vmem:[%s423 + $0x58] sm:%s416]
                %440 = vst [vmem:[%s424 + $0x38] sm:%s416] %v439
                %v441 = vld [vmem:[%s423 + $0x80] sm:%s416]
                %442 = vst [vmem:[%s424 + $0x40] sm:%s416] %v441
                %v443 = vld [vmem:[%s423 + $0x88] sm:%s416]
                %444 = vst [vmem:[%s424 + $0x48] sm:%s416] %v443
                %v445 = vld [vmem:[%s423 + $0x90] sm:%s416]
                %446 = vst [vmem:[%s424 + $0x50] sm:%s416] %v445
                %v447 = vld [vmem:[%s423 + $0x98] sm:%s416]
                %448 = vst [vmem:[%s424 + $0x58] sm:%s416] %v447
                %v449 = vld [vmem:[%s423 + $0xc0] sm:%s416]
                %450 = vst [vmem:[%s424 + $0x60] sm:%s416] %v449
                %v451 = vld [vmem:[%s423 + $0xc8] sm:%s416]
                %452 = vst [vmem:[%s424 + $0x68] sm:%s416] %v451
                %v453 = vld [vmem:[%s423 + $0xd0] sm:%s416]
                %454 = vst [vmem:[%s424 + $0x70] sm:%s416] %v453
                %v455 = vld [vmem:[%s423 + $0xd8] sm:%s416]
                %456 = vst [vmem:[%s424 + $0x78] sm:%s416] %v455
                %v457 = vld [vmem:[%s423 + $0x100] sm:%s416]
                %458 = vst [vmem:[%s424 + $0x80] sm:%s416] %v457
                %v459 = vld [vmem:[%s423 + $0x108] sm:%s416]
                %460 = vst [vmem:[%s424 + $0x88] sm:%s416] %v459
                %v461 = vld [vmem:[%s423 + $0x110] sm:%s416]
                %462 = vst [vmem:[%s424 + $0x90] sm:%s416] %v461
                %v463 = vld [vmem:[%s423 + $0x118] sm:%s416]
                %464 = vst [vmem:[%s424 + $0x98] sm:%s416] %v463
                %v465 = vld [vmem:[%s423 + $0x140] sm:%s416]
                %466 = vst [vmem:[%s424 + $0xa0] sm:%s416] %v465
                %v467 = vld [vmem:[%s423 + $0x148] sm:%s416]
                %468 = vst [vmem:[%s424 + $0xa8] sm:%s416] %v467
                %v469 = vld [vmem:[%s423 + $0x150] sm:%s416]
                %470 = vst [vmem:[%s424 + $0xb0] sm:%s416] %v469
                %v471 = vld [vmem:[%s423 + $0x158] sm:%s416]
                %472 = vst [vmem:[%s424 + $0xb8] sm:%s416] %v471
                %v473 = vld [vmem:[%s423 + $0x180] sm:%s416]
                %474 = vst [vmem:[%s424 + $0xc0] sm:%s416] %v473
                %v475 = vld [vmem:[%s423 + $0x188] sm:%s416]
                %476 = vst [vmem:[%s424 + $0xc8] sm:%s416] %v475
                %v477 = vld [vmem:[%s423 + $0x190] sm:%s416]
                %478 = vst [vmem:[%s424 + $0xd0] sm:%s416] %v477
                %v479 = vld [vmem:[%s423 + $0x198] sm:%s416]
                %480 = vst [vmem:[%s424 + $0xd8] sm:%s416] %v479
                %v481 = vld [vmem:[%s423 + $0x1c0] sm:%s416]
                %482 = vst [vmem:[%s424 + $0xe0] sm:%s416] %v481
                %v483 = vld [vmem:[%s423 + $0x1c8] sm:%s416]
                %484 = vst [vmem:[%s424 + $0xe8] sm:%s416] %v483
                %v485 = vld [vmem:[%s423 + $0x1d0] sm:%s416]
                %486 = vst [vmem:[%s424 + $0xf0] sm:%s416] %v485
                %v487 = vld [vmem:[%s423 + $0x1d8] sm:%s416]
                %488 = vst [vmem:[%s424 + $0xf8] sm:%s416] %v487
              $region87: #{tpu_custom_call.1} parent=81 // loop_footer
                %s422 = sadd.s32 1, %s418
              $region88: #{tpu_custom_call.1} parent=81 // loop_footer_branch
                %417 = sbr.rel target = $region84
              $region89: #{tpu_custom_call.1} parent=81 // loop_exit
                _
            $region82: #{tpu_custom_call.1} parent=73 // pred_fallthru
              _
          $region74: #{tpu_custom_call.1} parent=69 // pred_fallthru
            _
          %565 = vnop
        $region70: #{tpu_custom_call.1} parent=27 // pred_fallthru
          _
        // Predicated region
        $region105: #{tpu_custom_call.1} parent=27 // pred_check
          %p566 = pneg %p103
        $region106: #{tpu_custom_call.1} parent=27 // pred_check_branch
          %568 = sbr.rel (%p566) target = $region108
        $region107: #{tpu_custom_call.1} parent=27 // pred_region
          %s569 = smul.u32 4, %s22
          %p570 = scmp.lt.s32.totalorder %s569, 7
          %s571 = scalar_select %p570, %s569, 7
          %s572 = smul.addr %s571, 8
          %s573 = scalar_lea.vmem %s2, %s572
          %s574 = smul.u32 4, %s22
        $region108: #{tpu_custom_call.1} parent=27 // pred_fallthru
          _
      $region28: #{tpu_custom_call.1} parent=5 // pred_fallthru
        _
      %p575 = scmp.le.s32.totalorder 1, %s15
      %p576 = scmp.lt.s32.totalorder %s15, 3
      %p577 = pnand %p575, %p576
      %p578 = pneg %p577
      // Predicated region
      $region109: #{tpu_custom_call.1} parent=5 // pred_check
        _
      $region110: #{tpu_custom_call.1} parent=5 // pred_check_branch
        %580 = sbr.rel (%p577) target = $region112
      $region111: #{tpu_custom_call.1} parent=5 // pred_region
        %s581 = ssub.s32 %s15, 1
        %s582 = sand.u32 %s42, 1
        %s583 = sand.u32 %s42, 1
        %s584 = smul.addr %s583, 256
        %s585 = scalar_lea.vmem [#allocation3], %s584
        // Predicated region
        $region113: #{tpu_custom_call.1} parent=111 // pred_check
          %p586 = pneg %p55
        $region114: #{tpu_custom_call.1} parent=111 // pred_check_branch
          %588 = sbr.rel (%p586) target = $region116
        $region115: #{tpu_custom_call.1} parent=111 // pred_region
          _
        $region116: #{tpu_custom_call.1} parent=111 // pred_fallthru
          _
        %s589 = sand.u32 %s70, 1
        %s590 = sand.u32 %s70, 1
        %s591 = smul.addr %s590, 256
        %s592 = scalar_lea.vmem [#allocation4], %s591
        // Predicated region
        $region117: #{tpu_custom_call.1} parent=111 // pred_check
          %p593 = pneg %p83
        $region118: #{tpu_custom_call.1} parent=111 // pred_check_branch
          %595 = sbr.rel (%p593) target = $region120
        $region119: #{tpu_custom_call.1} parent=111 // pred_region
          _
        $region120: #{tpu_custom_call.1} parent=111 // pred_fallthru
          _
        %s596 = sand.u32 %s42, 1
        %s597 = sand.u32 %s42, 1
        %s598 = smul.addr %s597, 256
        %s599 = scalar_lea.vmem [#allocation3], %s598
        %p600 = pneg %p55
        %p601 = pneg %p52
        %s602 = sand.u32 %s70, 1
        %s603 = sand.u32 %s70, 1
        %s604 = smul.addr %s603, 256
        %s605 = scalar_lea.vmem [#allocation4], %s604
        %p606 = pneg %p83
        %p607 = pneg %p80
        %s608 = smul.u32 4, %s24
        %p609 = scmp.lt.s32.totalorder %s608, 7
        %s610 = scalar_select %p609, %s608, 7
        %s611 = smul.addr %s610, 8
        %s612 = scalar_lea.vmem %s2, %s611
        %p613 = pneg %p109
        %p614 = pneg %p106
        %p615 = pneg %p130
        %p616 = pneg %p127
        %p617 = pneg %p151
        %p618 = pneg %p148
        %p619 = pneg %p172
        %p620 = pneg %p169
        %p621 = pneg %p198
        %p622 = pneg %p195
        %s623 = sand.u32 %s185, 1
        %s624 = scalar_lea.sflag [#allocation6], %s623
        %s625 = sand.u32 %s185, 1
        %s626 = smul.addr %s625, 32
        %s627 = scalar_lea.vmem [#allocation5], %s626
        %s628 = smul.u32 8, %s25
        %s629 = smul.u32 4, %s24
        %s630 = smul.u32 8, %s25
        %s631 = smul.u32 4, %s24
        %s632 = smul.u32 4, %s24
        %p633 = scmp.lt.s32.totalorder %s632, 7
        %s634 = scalar_select %p633, %s632, 7
        %s635 = smul.addr %s634, 8
        %s636 = scalar_lea.vmem %s2, %s635
        %s637 = smul.u32 4, %s24
        %s638 = smul.u32 4, %s24
        %p639 = scmp.eq.s32.totalorder %s25, 0
        // Predicated region
        $region121: #{tpu_custom_call.1} parent=111 // pred_check
          %p640 = pneg %p639
        $region122: #{tpu_custom_call.1} parent=111 // pred_check_branch
          %642 = sbr.rel (%p640) target = $region124
        $region123: #{tpu_custom_call.1} parent=111 // pred_region
          %v643 = vld [vmem:[%s636] sm:$0xff]
          %v644 = vld [vmem:[%s636 + $0x8] sm:$0xff]
          %v645 = vld [vmem:[%s636 + $0x10] sm:$0xff]
          %v646 = vld [vmem:[%s636 + $0x18] sm:$0xff]
          %v647 = vld [vmem:[%s4] sm:$0xff]
          %v648 = vld [vmem:[%s4 + $0x8] sm:$0xff]
          %v649 = vld [vmem:[%s4 + $0x10] sm:$0xff]
          %v650 = vld [vmem:[%s4 + $0x18] sm:$0xff]
          %v651 = vld [vmem:[%s5] sm:$0x1]
          %v653 = vperm.slane %v651, 0
          %vm655 = vcmask 261120
          %v657 = vsel %vm655, %v643, 0
          %v660 = vsel %vm655, %v644, 0
          %v663 = vsel %vm655, %v645, 0
          %v666 = vsel %vm655, %v646, 0
          %668 = vmatpush.msra.mxu0 0.0
          %669 = vmatpush.msra.mxu0 0.0
          %670 = vmatpush.msra.mxu0 0.0
          %671 = vmatpush.msra.mxu0 0.0
          %672 = vmatpush.msra.mxu0 0.0
          %673 = vmatpush.msra.mxu0 0.0
          %674 = vmatpush.msra.mxu0 0.0
          %675 = vmatpush.msra.mxu0 0.0
          %676 = vmatpush.msra.mxu0 0.0
          %677 = vmatpush.msra.mxu0 0.0
          %678 = vmatpush.msra.mxu0 0.0
          %679 = vmatpush.msra.mxu0 0.0
          %680 = vmatpush.msra.mxu0 %v650
          %681 = vmatpush.msra.mxu0 %v649
          %682 = vmatpush.msra.mxu0 %v648
          %683 = vmatpush.msra.mxu0 %v647
          %684 = vmatmul.f32.gmra.mxu0 %v657
          %v685 = vpop.f32.mrf.mxu0
          %v686 = vadd.f32 %v653, %v685
          %687 = vmatmul.f32.gmra.mxu0 %v660
          %v688 = vpop.f32.mrf.mxu0
          %v689 = vadd.f32 %v653, %v688
          %690 = vmatmul.f32.gmra.mxu0 %v663
          %v691 = vpop.f32.mrf.mxu0
          %v692 = vadd.f32 %v653, %v691
          %693 = vmatmul.f32.gmra.mxu0 %v666
          %v694 = vpop.f32.mrf.mxu0
          %v695 = vadd.f32 %v653, %v694
          %696 = vdwg.mxu0
          %697 = vst [vmem:[#allocation2] sm:$0xff] %v686
          %698 = vst [vmem:[#allocation2 + $0x8] sm:$0xff] %v689
          %699 = vst [vmem:[#allocation2 + $0x10] sm:$0xff] %v692
          %700 = vst [vmem:[#allocation2 + $0x18] sm:$0xff] %v695
          %701 = vst [vmem:[%s627] sm:$0xff] 0.0
          %702 = vst [vmem:[%s627 + $0x8] sm:$0xff] 0.0
          %703 = vst [vmem:[%s627 + $0x10] sm:$0xff] 0.0
          %704 = vst [vmem:[%s627 + $0x18] sm:$0xff] 0.0
        $region124: #{tpu_custom_call.1} parent=111 // pred_fallthru
          _
        %v705 = vld [vmem:[%s585] sm:$0xff]
        %v706 = vld [vmem:[%s585 + $0x8] sm:$0xff]
        %v707 = vld [vmem:[%s585 + $0x10] sm:$0xff]
        %v708 = vld [vmem:[%s585 + $0x18] sm:$0xff]
        %v709 = vld [vmem:[%s585 + $0x20] sm:$0xff]
        %v710 = vld [vmem:[%s585 + $0x28] sm:$0xff]
        %v711 = vld [vmem:[%s585 + $0x30] sm:$0xff]
        %v712 = vld [vmem:[%s585 + $0x38] sm:$0xff]
        %v713 = vld [vmem:[%s585 + $0x40] sm:$0xff]
        %v714 = vld [vmem:[%s585 + $0x48] sm:$0xff]
        %v715 = vld [vmem:[%s585 + $0x50] sm:$0xff]
        %v716 = vld [vmem:[%s585 + $0x58] sm:$0xff]
        %v717 = vld [vmem:[%s585 + $0x60] sm:$0xff]
        %v718 = vld [vmem:[%s585 + $0x68] sm:$0xff]
        %v719 = vld [vmem:[%s585 + $0x70] sm:$0xff]
        %v720 = vld [vmem:[%s585 + $0x78] sm:$0xff]
        %v721 = vld [vmem:[%s585 + $0x80] sm:$0xff]
        %v722 = vld [vmem:[%s585 + $0x88] sm:$0xff]
        %v723 = vld [vmem:[%s585 + $0x90] sm:$0xff]
        %v724 = vld [vmem:[%s585 + $0x98] sm:$0xff]
        %v725 = vld [vmem:[%s585 + $0xa0] sm:$0xff]
        %v726 = vld [vmem:[%s585 + $0xa8] sm:$0xff]
        %v727 = vld [vmem:[%s585 + $0xb0] sm:$0xff]
        %v728 = vld [vmem:[%s585 + $0xb8] sm:$0xff]
        %v729 = vld [vmem:[%s585 + $0xc0] sm:$0xff]
        %v730 = vld [vmem:[%s585 + $0xc8] sm:$0xff]
        %v731 = vld [vmem:[%s585 + $0xd0] sm:$0xff]
        %v732 = vld [vmem:[%s585 + $0xd8] sm:$0xff]
        %v733 = vld [vmem:[%s585 + $0xe0] sm:$0xff]
        %v734 = vld [vmem:[%s585 + $0xe8] sm:$0xff]
        %v735 = vld [vmem:[%s585 + $0xf0] sm:$0xff]
        %v736 = vld [vmem:[%s585 + $0xf8] sm:$0xff]
        %v737 = vld [vmem:[%s592] sm:$0xff]
        %v738 = vld [vmem:[%s592 + $0x8] sm:$0xff]
        %v739 = vld [vmem:[%s592 + $0x10] sm:$0xff]
        %v740 = vld [vmem:[%s592 + $0x18] sm:$0xff]
        %v741 = vld [vmem:[%s592 + $0x20] sm:$0xff]
        %v742 = vld [vmem:[%s592 + $0x28] sm:$0xff]
        %v743 = vld [vmem:[%s592 + $0x30] sm:$0xff]
        %v744 = vld [vmem:[%s592 + $0x38] sm:$0xff]
        %v745 = vld [vmem:[%s592 + $0x40] sm:$0xff]
        %v746 = vld [vmem:[%s592 + $0x48] sm:$0xff]
        %v747 = vld [vmem:[%s592 + $0x50] sm:$0xff]
        %v748 = vld [vmem:[%s592 + $0x58] sm:$0xff]
        %v749 = vld [vmem:[%s592 + $0x60] sm:$0xff]
        %v750 = vld [vmem:[%s592 + $0x68] sm:$0xff]
        %v751 = vld [vmem:[%s592 + $0x70] sm:$0xff]
        %v752 = vld [vmem:[%s592 + $0x78] sm:$0xff]
        %v753 = vld [vmem:[%s592 + $0x80] sm:$0xff]
        %v754 = vld [vmem:[%s592 + $0x88] sm:$0xff]
        %v755 = vld [vmem:[%s592 + $0x90] sm:$0xff]
        %v756 = vld [vmem:[%s592 + $0x98] sm:$0xff]
        %v757 = vld [vmem:[%s592 + $0xa0] sm:$0xff]
        %v758 = vld [vmem:[%s592 + $0xa8] sm:$0xff]
        %v759 = vld [vmem:[%s592 + $0xb0] sm:$0xff]
        %v760 = vld [vmem:[%s592 + $0xb8] sm:$0xff]
        %v761 = vld [vmem:[%s592 + $0xc0] sm:$0xff]
        %v762 = vld [vmem:[%s592 + $0xc8] sm:$0xff]
        %v763 = vld [vmem:[%s592 + $0xd0] sm:$0xff]
        %v764 = vld [vmem:[%s592 + $0xd8] sm:$0xff]
        %v765 = vld [vmem:[%s592 + $0xe0] sm:$0xff]
        %v766 = vld [vmem:[%s592 + $0xe8] sm:$0xff]
        %v767 = vld [vmem:[%s592 + $0xf0] sm:$0xff]
        %v768 = vld [vmem:[%s592 + $0xf8] sm:$0xff]
        %770 = vset.pattern.permute.xlu0 0
        %771 = vperm.xlu0 %770, %v737
        %v772 = vpop.permute.xlu0 %771
        %775 = vset.pattern.permute.xlu0 0
        %776 = vperm.xlu0 %775, %v738
        %v777 = vpop.permute.xlu0 %776
        %780 = vset.pattern.permute.xlu0 0
        %781 = vperm.xlu0 %780, %v739
        %v782 = vpop.permute.xlu0 %781
        %785 = vset.pattern.permute.xlu0 0
        %786 = vperm.xlu0 %785, %v740
        %v787 = vpop.permute.xlu0 %786
        %790 = vset.pattern.permute.xlu0 0
        %791 = vperm.xlu0 %790, %v741
        %v792 = vpop.permute.xlu0 %791
        %795 = vset.pattern.permute.xlu0 0
        %796 = vperm.xlu0 %795, %v742
        %v797 = vpop.permute.xlu0 %796
        %800 = vset.pattern.permute.xlu0 0
        %801 = vperm.xlu0 %800, %v743
        %v802 = vpop.permute.xlu0 %801
        %805 = vset.pattern.permute.xlu0 0
        %806 = vperm.xlu0 %805, %v744
        %v807 = vpop.permute.xlu0 %806
        %810 = vset.pattern.permute.xlu0 0
        %811 = vperm.xlu0 %810, %v745
        %v812 = vpop.permute.xlu0 %811
        %815 = vset.pattern.permute.xlu0 0
        %816 = vperm.xlu0 %815, %v746
        %v817 = vpop.permute.xlu0 %816
        %820 = vset.pattern.permute.xlu0 0
        %821 = vperm.xlu0 %820, %v747
        %v822 = vpop.permute.xlu0 %821
        %825 = vset.pattern.permute.xlu0 0
        %826 = vperm.xlu0 %825, %v748
        %v827 = vpop.permute.xlu0 %826
        %830 = vset.pattern.permute.xlu0 0
        %831 = vperm.xlu0 %830, %v749
        %v832 = vpop.permute.xlu0 %831
        %835 = vset.pattern.permute.xlu0 0
        %836 = vperm.xlu0 %835, %v750
        %v837 = vpop.permute.xlu0 %836
        %840 = vset.pattern.permute.xlu0 0
        %841 = vperm.xlu0 %840, %v751
        %v842 = vpop.permute.xlu0 %841
        %845 = vset.pattern.permute.xlu0 0
        %846 = vperm.xlu0 %845, %v752
        %v847 = vpop.permute.xlu0 %846
        %850 = vset.pattern.permute.xlu0 0
        %851 = vperm.xlu0 %850, %v753
        %v852 = vpop.permute.xlu0 %851
        %855 = vset.pattern.permute.xlu0 0
        %856 = vperm.xlu0 %855, %v754
        %v857 = vpop.permute.xlu0 %856
        %860 = vset.pattern.permute.xlu0 0
        %861 = vperm.xlu0 %860, %v755
        %v862 = vpop.permute.xlu0 %861
        %865 = vset.pattern.permute.xlu0 0
        %866 = vperm.xlu0 %865, %v756
        %v867 = vpop.permute.xlu0 %866
        %870 = vset.pattern.permute.xlu0 0
        %871 = vperm.xlu0 %870, %v757
        %v872 = vpop.permute.xlu0 %871
        %875 = vset.pattern.permute.xlu0 0
        %876 = vperm.xlu0 %875, %v758
        %v877 = vpop.permute.xlu0 %876
        %880 = vset.pattern.permute.xlu0 0
        %881 = vperm.xlu0 %880, %v759
        %v882 = vpop.permute.xlu0 %881
        %885 = vset.pattern.permute.xlu0 0
        %886 = vperm.xlu0 %885, %v760
        %v887 = vpop.permute.xlu0 %886
        %890 = vset.pattern.permute.xlu0 0
        %891 = vperm.xlu0 %890, %v761
        %v892 = vpop.permute.xlu0 %891
        %895 = vset.pattern.permute.xlu0 0
        %896 = vperm.xlu0 %895, %v762
        %v897 = vpop.permute.xlu0 %896
        %900 = vset.pattern.permute.xlu0 0
        %901 = vperm.xlu0 %900, %v763
        %v902 = vpop.permute.xlu0 %901
        %905 = vset.pattern.permute.xlu0 0
        %906 = vperm.xlu0 %905, %v764
        %v907 = vpop.permute.xlu0 %906
        %910 = vset.pattern.permute.xlu0 0
        %911 = vperm.xlu0 %910, %v765
        %v912 = vpop.permute.xlu0 %911
        %915 = vset.pattern.permute.xlu0 0
        %916 = vperm.xlu0 %915, %v766
        %v917 = vpop.permute.xlu0 %916
        %920 = vset.pattern.permute.xlu0 0
        %921 = vperm.xlu0 %920, %v767
        %v922 = vpop.permute.xlu0 %921
        %925 = vset.pattern.permute.xlu0 0
        %926 = vperm.xlu0 %925, %v768
        %v927 = vpop.permute.xlu0 %926
        %v929 = vmul.f32 %v705, %v772
        %v930 = vmul.f32 %v706, %v777
        %v931 = vmul.f32 %v707, %v782
        %v932 = vmul.f32 %v708, %v787
        %v933 = vmul.f32 %v709, %v792
        %v934 = vmul.f32 %v710, %v797
        %v935 = vmul.f32 %v711, %v802
        %v936 = vmul.f32 %v712, %v807
        %v937 = vmul.f32 %v713, %v812
        %v938 = vmul.f32 %v714, %v817
        %v939 = vmul.f32 %v715, %v822
        %v940 = vmul.f32 %v716, %v827
        %v941 = vmul.f32 %v717, %v832
        %v942 = vmul.f32 %v718, %v837
        %v943 = vmul.f32 %v719, %v842
        %v944 = vmul.f32 %v720, %v847
        %v945 = vmul.f32 %v721, %v852
        %v946 = vmul.f32 %v722, %v857
        %v947 = vmul.f32 %v723, %v862
        %v948 = vmul.f32 %v724, %v867
        %v949 = vmul.f32 %v725, %v872
        %v950 = vmul.f32 %v726, %v877
        %v951 = vmul.f32 %v727, %v882
        %v952 = vmul.f32 %v728, %v887
        %v953 = vmul.f32 %v729, %v892
        %v954 = vmul.f32 %v730, %v897
        %v955 = vmul.f32 %v731, %v902
        %v956 = vmul.f32 %v732, %v907
        %v957 = vmul.f32 %v733, %v912
        %v958 = vmul.f32 %v734, %v917
        %v959 = vmul.f32 %v735, %v922
        %v960 = vmul.f32 %v736, %v927
        %v961 = vld [vmem:[%s3] sm:$0xff]
        %v962 = vld [vmem:[%s3 + $0x8] sm:$0xff]
        %v963 = vld [vmem:[%s3 + $0x10] sm:$0xff]
        %v964 = vld [vmem:[%s3 + $0x18] sm:$0xff]
        %vm965 = vcmask 261120
        %v967 = vsel %vm965, %v929, 0
        %v970 = vsel %vm965, %v930, 0
        %v973 = vsel %vm965, %v931, 0
        %v976 = vsel %vm965, %v932, 0
        %v979 = vsel %vm965, %v933, 0
        %v982 = vsel %vm965, %v934, 0
        %v985 = vsel %vm965, %v935, 0
        %v988 = vsel %vm965, %v936, 0
        %v991 = vsel %vm965, %v937, 0
        %v994 = vsel %vm965, %v938, 0
        %v997 = vsel %vm965, %v939, 0
        %v1000 = vsel %vm965, %v940, 0
        %v1003 = vsel %vm965, %v941, 0
        %v1006 = vsel %vm965, %v942, 0
        %v1009 = vsel %vm965, %v943, 0
        %v1012 = vsel %vm965, %v944, 0
        %v1015 = vsel %vm965, %v945, 0
        %v1018 = vsel %vm965, %v946, 0
        %v1021 = vsel %vm965, %v947, 0
        %v1024 = vsel %vm965, %v948, 0
        %v1027 = vsel %vm965, %v949, 0
        %v1030 = vsel %vm965, %v950, 0
        %v1033 = vsel %vm965, %v951, 0
        %v1036 = vsel %vm965, %v952, 0
        %v1039 = vsel %vm965, %v953, 0
        %v1042 = vsel %vm965, %v954, 0
        %v1045 = vsel %vm965, %v955, 0
        %v1048 = vsel %vm965, %v956, 0
        %v1051 = vsel %vm965, %v957, 0
        %v1054 = vsel %vm965, %v958, 0
        %v1057 = vsel %vm965, %v959, 0
        %v1060 = vsel %vm965, %v960, 0
        %1062 = vmatpush.msra.mxu0 0.0
        %1063 = vmatpush.msra.mxu0 0.0
        %1064 = vmatpush.msra.mxu0 0.0
        %1065 = vmatpush.msra.mxu0 0.0
        %1066 = vmatpush.msra.mxu0 0.0
        %1067 = vmatpush.msra.mxu0 0.0
        %1068 = vmatpush.msra.mxu0 0.0
        %1069 = vmatpush.msra.mxu0 0.0
        %1070 = vmatpush.msra.mxu0 0.0
        %1071 = vmatpush.msra.mxu0 0.0
        %1072 = vmatpush.msra.mxu0 0.0
        %1073 = vmatpush.msra.mxu0 0.0
        %1074 = vmatpush.msra.mxu0 %v964
        %1075 = vmatpush.msra.mxu0 %v963
        %1076 = vmatpush.msra.mxu0 %v962
        %1077 = vmatpush.msra.mxu0 %v961
        %1078 = vmatmul.f32.gmra.mxu0 %v967
        %v1079 = vpop.f32.mrf.mxu0
        %v1080 = vadd.f32 0.0, %v1079
        %1081 = vmatmul.f32.gmra.mxu0 %v970
        %v1082 = vpop.f32.mrf.mxu0
        %v1083 = vadd.f32 0.0, %v1082
        %1084 = vmatmul.f32.gmra.mxu0 %v973
        %v1085 = vpop.f32.mrf.mxu0
        %v1086 = vadd.f32 0.0, %v1085
        %1087 = vmatmul.f32.gmra.mxu0 %v976
        %v1088 = vpop.f32.mrf.mxu0
        %v1089 = vadd.f32 0.0, %v1088
        %1090 = vmatmul.f32.gmra.mxu0 %v979
        %v1091 = vpop.f32.mrf.mxu0
        %v1092 = vadd.f32 0.0, %v1091
        %1093 = vmatmul.f32.gmra.mxu0 %v982
        %v1094 = vpop.f32.mrf.mxu0
        %v1095 = vadd.f32 0.0, %v1094
        %1096 = vmatmul.f32.gmra.mxu0 %v985
        %v1097 = vpop.f32.mrf.mxu0
        %v1098 = vadd.f32 0.0, %v1097
        %1099 = vmatmul.f32.gmra.mxu0 %v988
        %v1100 = vpop.f32.mrf.mxu0
        %v1101 = vadd.f32 0.0, %v1100
        %1102 = vmatmul.f32.gmra.mxu0 %v991
        %v1103 = vpop.f32.mrf.mxu0
        %v1104 = vadd.f32 0.0, %v1103
        %1105 = vmatmul.f32.gmra.mxu0 %v994
        %v1106 = vpop.f32.mrf.mxu0
        %v1107 = vadd.f32 0.0, %v1106
        %1108 = vmatmul.f32.gmra.mxu0 %v997
        %v1109 = vpop.f32.mrf.mxu0
        %v1110 = vadd.f32 0.0, %v1109
        %1111 = vmatmul.f32.gmra.mxu0 %v1000
        %v1112 = vpop.f32.mrf.mxu0
        %v1113 = vadd.f32 0.0, %v1112
        %1114 = vmatmul.f32.gmra.mxu0 %v1003
        %v1115 = vpop.f32.mrf.mxu0
        %v1116 = vadd.f32 0.0, %v1115
        %1117 = vmatmul.f32.gmra.mxu0 %v1006
        %v1118 = vpop.f32.mrf.mxu0
        %v1119 = vadd.f32 0.0, %v1118
        %1120 = vmatmul.f32.gmra.mxu0 %v1009
        %v1121 = vpop.f32.mrf.mxu0
        %v1122 = vadd.f32 0.0, %v1121
        %1123 = vmatmul.f32.gmra.mxu0 %v1012
        %v1124 = vpop.f32.mrf.mxu0
        %v1125 = vadd.f32 0.0, %v1124
        %1126 = vmatmul.f32.gmra.mxu0 %v1015
        %v1127 = vpop.f32.mrf.mxu0
        %v1128 = vadd.f32 0.0, %v1127
        %1129 = vmatmul.f32.gmra.mxu0 %v1018
        %v1130 = vpop.f32.mrf.mxu0
        %v1131 = vadd.f32 0.0, %v1130
        %1132 = vmatmul.f32.gmra.mxu0 %v1021
        %v1133 = vpop.f32.mrf.mxu0
        %v1134 = vadd.f32 0.0, %v1133
        %1135 = vmatmul.f32.gmra.mxu0 %v1024
        %v1136 = vpop.f32.mrf.mxu0
        %v1137 = vadd.f32 0.0, %v1136
        %1138 = vmatmul.f32.gmra.mxu0 %v1027
        %v1139 = vpop.f32.mrf.mxu0
        %v1140 = vadd.f32 0.0, %v1139
        %1141 = vmatmul.f32.gmra.mxu0 %v1030
        %v1142 = vpop.f32.mrf.mxu0
        %v1143 = vadd.f32 0.0, %v1142
        %1144 = vmatmul.f32.gmra.mxu0 %v1033
        %v1145 = vpop.f32.mrf.mxu0
        %v1146 = vadd.f32 0.0, %v1145
        %1147 = vmatmul.f32.gmra.mxu0 %v1036
        %v1148 = vpop.f32.mrf.mxu0
        %v1149 = vadd.f32 0.0, %v1148
        %1150 = vmatmul.f32.gmra.mxu0 %v1039
        %v1151 = vpop.f32.mrf.mxu0
        %v1152 = vadd.f32 0.0, %v1151
        %1153 = vmatmul.f32.gmra.mxu0 %v1042
        %v1154 = vpop.f32.mrf.mxu0
        %v1155 = vadd.f32 0.0, %v1154
        %1156 = vmatmul.f32.gmra.mxu0 %v1045
        %v1157 = vpop.f32.mrf.mxu0
        %v1158 = vadd.f32 0.0, %v1157
        %1159 = vmatmul.f32.gmra.mxu0 %v1048
        %v1160 = vpop.f32.mrf.mxu0
        %v1161 = vadd.f32 0.0, %v1160
        %1162 = vmatmul.f32.gmra.mxu0 %v1051
        %v1163 = vpop.f32.mrf.mxu0
        %v1164 = vadd.f32 0.0, %v1163
        %1165 = vmatmul.f32.gmra.mxu0 %v1054
        %v1166 = vpop.f32.mrf.mxu0
        %v1167 = vadd.f32 0.0, %v1166
        %1168 = vmatmul.f32.gmra.mxu0 %v1057
        %v1169 = vpop.f32.mrf.mxu0
        %v1170 = vadd.f32 0.0, %v1169
        %1171 = vmatmul.f32.gmra.mxu0 %v1060
        %v1172 = vpop.f32.mrf.mxu0
        %v1173 = vadd.f32 0.0, %v1172
        %1174 = vdwg.mxu0
        %v1175 = vld [vmem:[#allocation2] sm:$0xff]
        %v1176 = vld [vmem:[#allocation2 + $0x8] sm:$0xff]
        %v1177 = vld [vmem:[#allocation2 + $0x10] sm:$0xff]
        %v1178 = vld [vmem:[#allocation2 + $0x18] sm:$0xff]
        %v1179 = vadd.f32 %v1080, %v1175
        %v1180 = vadd.f32 %v1083, %v1176
        %v1181 = vadd.f32 %v1086, %v1177
        %v1182 = vadd.f32 %v1089, %v1178
        %v1183 = vadd.f32 %v1092, %v1175
        %v1184 = vadd.f32 %v1095, %v1176
        %v1185 = vadd.f32 %v1098, %v1177
        %v1186 = vadd.f32 %v1101, %v1178
        %v1187 = vadd.f32 %v1104, %v1175
        %v1188 = vadd.f32 %v1107, %v1176
        %v1189 = vadd.f32 %v1110, %v1177
        %v1190 = vadd.f32 %v1113, %v1178
        %v1191 = vadd.f32 %v1116, %v1175
        %v1192 = vadd.f32 %v1119, %v1176
        %v1193 = vadd.f32 %v1122, %v1177
        %v1194 = vadd.f32 %v1125, %v1178
        %v1195 = vadd.f32 %v1128, %v1175
        %v1196 = vadd.f32 %v1131, %v1176
        %v1197 = vadd.f32 %v1134, %v1177
        %v1198 = vadd.f32 %v1137, %v1178
        %v1199 = vadd.f32 %v1140, %v1175
        %v1200 = vadd.f32 %v1143, %v1176
        %v1201 = vadd.f32 %v1146, %v1177
        %v1202 = vadd.f32 %v1149, %v1178
        %v1203 = vadd.f32 %v1152, %v1175
        %v1204 = vadd.f32 %v1155, %v1176
        %v1205 = vadd.f32 %v1158, %v1177
        %v1206 = vadd.f32 %v1161, %v1178
        %v1207 = vadd.f32 %v1164, %v1175
        %v1208 = vadd.f32 %v1167, %v1176
        %v1209 = vadd.f32 %v1170, %v1177
        %v1210 = vadd.f32 %v1173, %v1178
        %v1211 = vmax.f32 %v1179, 0.0
        %v1212 = vmax.f32 %v1180, 0.0
        %v1213 = vmax.f32 %v1181, 0.0
        %v1214 = vmax.f32 %v1182, 0.0
        %v1215 = vmax.f32 %v1183, 0.0
        %v1216 = vmax.f32 %v1184, 0.0
        %v1217 = vmax.f32 %v1185, 0.0
        %v1218 = vmax.f32 %v1186, 0.0
        %v1219 = vmax.f32 %v1187, 0.0
        %v1220 = vmax.f32 %v1188, 0.0
        %v1221 = vmax.f32 %v1189, 0.0
        %v1222 = vmax.f32 %v1190, 0.0
        %v1223 = vmax.f32 %v1191, 0.0
        %v1224 = vmax.f32 %v1192, 0.0
        %v1225 = vmax.f32 %v1193, 0.0
        %v1226 = vmax.f32 %v1194, 0.0
        %v1227 = vmax.f32 %v1195, 0.0
        %v1228 = vmax.f32 %v1196, 0.0
        %v1229 = vmax.f32 %v1197, 0.0
        %v1230 = vmax.f32 %v1198, 0.0
        %v1231 = vmax.f32 %v1199, 0.0
        %v1232 = vmax.f32 %v1200, 0.0
        %v1233 = vmax.f32 %v1201, 0.0
        %v1234 = vmax.f32 %v1202, 0.0
        %v1235 = vmax.f32 %v1203, 0.0
        %v1236 = vmax.f32 %v1204, 0.0
        %v1237 = vmax.f32 %v1205, 0.0
        %v1238 = vmax.f32 %v1206, 0.0
        %v1239 = vmax.f32 %v1207, 0.0
        %v1240 = vmax.f32 %v1208, 0.0
        %v1241 = vmax.f32 %v1209, 0.0
        %v1242 = vmax.f32 %v1210, 0.0
        %v1243 = vld [vmem:[%s627] sm:$0xff]
        %v1244 = vld [vmem:[%s627 + $0x8] sm:$0xff]
        %v1245 = vld [vmem:[%s627 + $0x10] sm:$0xff]
        %v1246 = vld [vmem:[%s627 + $0x18] sm:$0xff]
        %v1247 = vadd.f32 %v1211, %v1215
        %v1248 = vadd.f32 %v1247, %v1219
        %v1249 = vadd.f32 %v1248, %v1223
        %v1250 = vadd.f32 %v1249, %v1227
        %v1251 = vadd.f32 %v1250, %v1231
        %v1252 = vadd.f32 %v1251, %v1235
        %v1253 = vadd.f32 %v1252, %v1239
        %v1254 = vadd.f32 %v1212, %v1216
        %v1255 = vadd.f32 %v1254, %v1220
        %v1256 = vadd.f32 %v1255, %v1224
        %v1257 = vadd.f32 %v1256, %v1228
        %v1258 = vadd.f32 %v1257, %v1232
        %v1259 = vadd.f32 %v1258, %v1236
        %v1260 = vadd.f32 %v1259, %v1240
        %v1261 = vadd.f32 %v1213, %v1217
        %v1262 = vadd.f32 %v1261, %v1221
        %v1263 = vadd.f32 %v1262, %v1225
        %v1264 = vadd.f32 %v1263, %v1229
        %v1265 = vadd.f32 %v1264, %v1233
        %v1266 = vadd.f32 %v1265, %v1237
        %v1267 = vadd.f32 %v1266, %v1241
        %v1268 = vadd.f32 %v1214, %v1218
        %v1269 = vadd.f32 %v1268, %v1222
        %v1270 = vadd.f32 %v1269, %v1226
        %v1271 = vadd.f32 %v1270, %v1230
        %v1272 = vadd.f32 %v1271, %v1234
        %v1273 = vadd.f32 %v1272, %v1238
        %v1274 = vadd.f32 %v1273, %v1242
        %v1275 = vadd.f32 %v1243, %v1253
        %v1276 = vadd.f32 %v1244, %v1260
        %v1277 = vadd.f32 %v1245, %v1267
        %v1278 = vadd.f32 %v1246, %v1274
        %1279 = vst [vmem:[%s627] sm:$0xff] %v1275
        %1280 = vst [vmem:[%s627 + $0x8] sm:$0xff] %v1276
        %1281 = vst [vmem:[%s627 + $0x10] sm:$0xff] %v1277
        %1282 = vst [vmem:[%s627 + $0x18] sm:$0xff] %v1278
        // Predicated region
        $region125: #{tpu_custom_call.1} parent=111 // pred_check
          %p1283 = pneg %p639
        $region126: #{tpu_custom_call.1} parent=111 // pred_check_branch
          %1285 = sbr.rel (%p1283) target = $region128
        $region127: #{tpu_custom_call.1} parent=111 // pred_region
          %v1286 = vld [vmem:[%s627] sm:$0xff]
          %v1287 = vld [vmem:[%s627 + $0x8] sm:$0xff]
          %v1288 = vld [vmem:[%s627 + $0x10] sm:$0xff]
          %v1289 = vld [vmem:[%s627 + $0x18] sm:$0xff]
          %v1290 = vmul.f32 %v1286, 0.125
          %v1291 = vmul.f32 %v1287, 0.125
          %v1292 = vmul.f32 %v1288, 0.125
          %v1293 = vmul.f32 %v1289, 0.125
          %1294 = vst [vmem:[%s627] sm:$0xff] %v1290
          %1295 = vst [vmem:[%s627 + $0x8] sm:$0xff] %v1291
          %1296 = vst [vmem:[%s627 + $0x10] sm:$0xff] %v1292
          %1297 = vst [vmem:[%s627 + $0x18] sm:$0xff] %v1293
        $region128: #{tpu_custom_call.1} parent=111 // pred_fallthru
          _
        %s1298 = sand.u32 %s185, 1
        %s1299 = scalar_lea.sflag [#allocation6], %s1298
        %s1300 = sand.u32 %s185, 1
        %s1301 = smul.addr %s1300, 32
        %s1302 = scalar_lea.vmem [#allocation5], %s1301
        // Predicated region
        $region129: #{tpu_custom_call.1} parent=111 // pred_check
          %p1303 = pneg %p195
        $region130: #{tpu_custom_call.1} parent=111 // pred_check_branch
          %1305 = sbr.rel (%p1303) target = $region132
        $region131: #{tpu_custom_call.1} parent=111 // pred_region
          %s1306 = smul.u32 4, %s24
          %1308 = vsyncadd %s1299, 0
          %s1309 = smul.addr %s1306, 8
          %s1310 = scalar_lea.hbm %s6, %s1309
          %s1311 = sshll.u32 %s1302, 4
          %s1312 = int_to_ptr.vmem [resolvable:$true] %s1311
          %s1313 = sshll.u32 %s1310, 4
          %s1314 = int_to_ptr.hbm [resolvable:$true] %s1313
          %1319 = dma.vmem_to_hbm [thread:$0]  %s1312, 512, %s1314, %s1299, 128, 128, 8
        $region132: #{tpu_custom_call.1} parent=111 // pred_fallthru
          _
      $region112: #{tpu_custom_call.1} parent=5 // pred_fallthru
        _
      %p1320 = scmp.le.s32.totalorder 2, %s15
      // Predicated region
      $region133: #{tpu_custom_call.1} parent=5 // pred_check
        %p1321 = pneg %p1320
      $region134: #{tpu_custom_call.1} parent=5 // pred_check_branch
        %1323 = sbr.rel (%p1321) target = $region136
      $region135: #{tpu_custom_call.1} parent=5 // pred_region
        %s1324 = ssub.s32 %s15, 2
        // Predicated region
        $region137: #{tpu_custom_call.1} parent=135 // pred_check
          %p1325 = pneg %p201
        $region138: #{tpu_custom_call.1} parent=135 // pred_check_branch
          %1327 = sbr.rel (%p1325) target = $region140
        $region139: #{tpu_custom_call.1} parent=135 // pred_region
          %s1328 = sand.u32 %s186, 1
          %s1329 = scalar_lea.sflag [#allocation6], %s1328
          %s1330 = sand.u32 %s186, 1
          %s1331 = smul.addr %s1330, 32
          %s1332 = scalar_lea.vmem [#allocation5], %s1331
          %1334 = dma.done %s1329, 512
        $region140: #{tpu_custom_call.1} parent=135 // pred_fallthru
          _
      $region136: #{tpu_custom_call.1} parent=5 // pred_fallthru
        _
    $region6: #{tpu_custom_call.1} parent=1 // loop_footer
      %s19 = sadd.s32 1, %s15
    $region7: #{tpu_custom_call.1} parent=1 // loop_footer_branch
      %14 = sbr.rel target = $region3
    $region8: #{tpu_custom_call.1} parent=1 // loop_exit
      _
    %1335 = vsyncpa [#allocation6], 1
    %s1336 = scalar_lea.sflag [#allocation6], 1
    %1337 = vsyncpa %s1336, 1

</llo_original>
